<compile_context>
chip_gen: v6e
topology: v6e:2x2x1
jax: 0.10.0
libtpu: 0.0.40
codegen_flags: <defaults>
</compile_context>

<pallas_src>
import jax
import jax.numpy as jnp
from jax import lax
from jax.experimental import pallas as pl
from jax.experimental.pallas import tpu as pltpu

BN_EPS = 1e-5
VMEM_LIMIT = 48 * 1024 * 1024


def _round_up(x, m):
    return (x + m - 1) // m * m


# ---------------- Pallas tiled matmul with fused BN / residual / ReLU epilogue -------------


def _make_matmul_kernel(has_residual, apply_relu):
    def kernel(*refs):
        if has_residual:
            a_ref, w_ref, scale_ref, shift_ref, res_ref, o_ref, acc_ref = refs
        else:
            a_ref, w_ref, scale_ref, shift_ref, o_ref, acc_ref = refs
            res_ref = None
        kk = pl.program_id(2)

        @pl.when(kk == 0)
        def _():
            acc_ref[...] = jnp.zeros_like(acc_ref)

        acc_ref[...] += jnp.dot(
            a_ref[...], w_ref[...], preferred_element_type=jnp.float32
        )

        @pl.when(kk == pl.num_programs(2) - 1)
        def _():
            out = acc_ref[...] * scale_ref[...] + shift_ref[...]
            if res_ref is not None:
                out = out + res_ref[...].astype(jnp.float32)
            if apply_relu:
                out = jnp.maximum(out, 0.0)
            o_ref[...] = out.astype(o_ref.dtype)

    return kernel


def matmul_affine(a, w, scale, shift, *, residual=None, relu=False,
                  out_dtype=jnp.bfloat16, tm=256, tn=256, tk=512):
    """out = relu?(a @ w * scale + shift (+ residual)).  a:(M,K) w:(K,N), bf16 MXU, f32 acc."""
    m, k = a.shape
    k2, n = w.shape
    assert k == k2

    # Tile sizes: 128-aligned (lane-dense), no bigger than the padded problem.
    tm = min(tm, _round_up(m, 128))
    tn = min(tn, _round_up(n, 128))
    tk = min(tk, _round_up(k, 128))
    mp, np_, kp = _round_up(m, tm), _round_up(n, tn), _round_up(k, tk)

    a_p = jnp.pad(a.astype(jnp.bfloat16), ((0, mp - m), (0, kp - k)))
    w_p = jnp.pad(w.astype(jnp.bfloat16), ((0, kp - k), (0, np_ - n)))
    scale_p = jnp.pad(scale.reshape(1, n).astype(jnp.float32), ((0, 0), (0, np_ - n)))
    shift_p = jnp.pad(shift.reshape(1, n).astype(jnp.float32), ((0, 0), (0, np_ - n)))

    inputs = [a_p, w_p, scale_p, shift_p]
    in_specs = [
        pl.BlockSpec((tm, tk), lambda i, j, kk: (i, kk)),
        pl.BlockSpec((tk, tn), lambda i, j, kk: (kk, j)),
        pl.BlockSpec((1, tn), lambda i, j, kk: (0, j)),
        pl.BlockSpec((1, tn), lambda i, j, kk: (0, j)),
    ]
    if residual is not None:
        r_p = jnp.pad(residual.astype(jnp.bfloat16), ((0, mp - m), (0, np_ - n)))
        inputs.append(r_p)
        in_specs.append(pl.BlockSpec((tm, tn), lambda i, j, kk: (i, j)))

    out = pl.pallas_call(
        _make_matmul_kernel(residual is not None, relu),
        out_shape=jax.ShapeDtypeStruct((mp, np_), out_dtype),
        grid=(mp // tm, np_ // tn, kp // tk),
        in_specs=in_specs,
        out_specs=pl.BlockSpec((tm, tn), lambda i, j, kk: (i, j)),
        scratch_shapes=[pltpu.VMEM((tm, tn), jnp.float32)],
        compiler_params=pltpu.CompilerParams(
            dimension_semantics=("parallel", "parallel", "arbitrary"),
            vmem_limit_bytes=VMEM_LIMIT,
        ),
    )(*inputs)
    return out[:m, :n]


# ---------------- conv wrappers (NHWC activations, PyTorch OIHW weights) -------------------


def bn_fold(bn, eps=BN_EPS):
    scale = bn["gamma"] / jnp.sqrt(bn["var"] + eps)
    shift = bn["beta"] - bn["mean"] * scale
    return scale, shift


def conv1x1_bn(x, w, bn, *, stride=1, relu=False, residual=None, out_dtype=jnp.bfloat16):
    """1x1 conv + folded BN (+residual)(+ReLU).  No im2col: pure reshape."""
    if stride > 1:
        x = x[:, ::stride, ::stride, :]
    n, h, wd, cin = x.shape
    cout = w.shape[0]
    a = x.reshape(n * h * wd, cin)
    w2 = w.reshape(cout, cin).T
    scale, shift = bn_fold(bn)
    res = None if residual is None else residual.reshape(n * h * wd, cout)
    out = matmul_affine(a, w2, scale, shift, residual=res, relu=relu, out_dtype=out_dtype)
    return out.reshape(n, h, wd, cout)


def _im2col(x, kh, kw, stride, padding, dilation):
    n, h, w, c = x.shape
    ho = (h + 2 * padding - dilation * (kh - 1) - 1) // stride + 1
    wo = (w + 2 * padding - dilation * (kw - 1) - 1) // stride + 1
    xp = jnp.pad(x, ((0, 0), (padding, padding), (padding, padding), (0, 0)))
    patches = []
    for i in range(kh):
        for j in range(kw):
            h0 = i * dilation
            w0 = j * dilation
            patches.append(
                xp[:, h0:h0 + (ho - 1) * stride + 1:stride,
                      w0:w0 + (wo - 1) * stride + 1:stride, :]
            )
    col = jnp.stack(patches, axis=3)  # (n, ho, wo, kh*kw, c)
    return col.reshape(n * ho * wo, kh * kw * c).astype(jnp.bfloat16), (n, ho, wo)


def conv_kxk_bn(x, w, bn, *, stride=1, padding=0, dilation=1, relu=False,
                residual=None, out_dtype=jnp.bfloat16):
    """kxk (dilated) conv + folded BN (+residual)(+ReLU) via bf16 im2col + tiled matmul."""
    cout, cin, kh, kw = w.shape
    cols, (n, ho, wo) = _im2col(x, kh, kw, stride, padding, dilation)
    w2 = jnp.transpose(w, (2, 3, 1, 0)).reshape(kh * kw * cin, cout)
    scale, shift = bn_fold(bn)
    res = None if residual is None else residual.reshape(n * ho * wo, cout)
    out = matmul_affine(cols, w2, scale, shift, residual=res, relu=relu, out_dtype=out_dtype)
    return out.reshape(n, ho, wo, cout)


# ---------------- Bottleneck (expansion = 4) ------------------------------------------------


def bottleneck_forward(x, p, *, stride=1, dilation=1, out_dtype=jnp.bfloat16):
    """x: NHWC (bf16).  Matches PyTorch Bottleneck.forward in eval mode."""
    out = conv1x1_bn(x, p["conv1_w"], p["bn1"], stride=stride, relu=True)
    out = conv_kxk_bn(out, p["conv2_w"], p["bn2"], padding=dilation,
                      dilation=dilation, relu=True)
    if "down_w" in p:
        residual = conv1x1_bn(x, p["down_w"], p["down_bn"], stride=stride)
    else:
        residual = x
    out = conv1x1_bn(out, p["conv3_w"], p["bn3"], residual=residual, relu=True,
                     out_dtype=out_dtype)
    return out


def bottleneck_apply(params, x_nchw, *, stride=1, dilation=1):
    """Public NCHW/f32 interface for a single Bottleneck block."""
    x = jnp.transpose(x_nchw, (0, 2, 3, 1)).astype(jnp.bfloat16)
    y = bottleneck_forward(x, params, stride=stride, dilation=dilation,
                           out_dtype=jnp.float32)
    return jnp.transpose(y, (0, 3, 1, 2))


# ---------------- plain-JAX reference (for correctness check) ------------------------------


def ref_bottleneck(params, x_nchw, *, stride=1, dilation=1):
    def conv(x, w, stride=1, padding=0, dilation=1):
        return lax.conv_general_dilated(
            x, w, (stride, stride), [(padding, padding)] * 2,
            rhs_dilation=(dilation, dilation),
            dimension_numbers=("NCHW", "OIHW", "NCHW"))

    def bn(x, b):
        s = b["gamma"] / jnp.sqrt(b["var"] + BN_EPS)
        t = b["beta"] - b["mean"] * s
        return x * s[None, :, None, None] + t[None, :, None, None]

    out = jax.nn.relu(bn(conv(x_nchw, params["conv1_w"], stride=stride), params["bn1"]))
    out = jax.nn.relu(bn(conv(out, params["conv2_w"], padding=dilation,
                              dilation=dilation), params["bn2"]))
    out = bn(conv(out, params["conv3_w"]), params["bn3"])
    if "down_w" in params:
        residual = bn(conv(x_nchw, params["down_w"], stride=stride), params["down_bn"])
    else:
        residual = x_nchw
    return jax.nn.relu(out + residual)


# ---------------- deterministic parameter initialization -----------------------------------


def make_bn(key, c):
    k1, k2, k3, k4 = jax.random.split(key, 4)
    return dict(
        gamma=1.0 + 0.1 * jax.random.normal(k1, (c,), jnp.float32),
        beta=0.1 * jax.random.normal(k2, (c,), jnp.float32),
        mean=0.1 * jax.random.normal(k3, (c,), jnp.float32),
        var=1.0 + 0.1 * jax.random.uniform(k4, (c,), jnp.float32),
    )


def init_bottleneck(key, inplanes, planes, *, downsample=False):
    keys = jax.random.split(key, 8)
    p = {
        "conv1_w": 0.05 * jax.random.normal(keys[0], (planes, inplanes, 1, 1), jnp.float32),
        "bn1": make_bn(keys[1], planes),
        "conv2_w": 0.05 * jax.random.normal(keys[2], (planes, planes, 3, 3), jnp.float32),
        "bn2": make_bn(keys[3], planes),
        "conv3_w": 0.05 * jax.random.normal(keys[4], (planes * 4, planes, 1, 1), jnp.float32),
        "bn3": make_bn(keys[5], planes * 4),
    }
    if downsample:
        p["down_w"] = 0.05 * jax.random.normal(keys[6], (planes * 4, inplanes, 1, 1),
                                               jnp.float32)
        p["down_bn"] = make_bn(keys[7], planes * 4)
    return p


# ---------------- main ----------------------------------------------------------------------

if __name__ == "__main__":
    root = jax.random.PRNGKey(0)
    k_a, k_b, k_x = jax.random.split(root, 3)

    # Block A: strided, with downsample (channel change 32 -> 64).
    params_a = init_bottleneck(k_a, 32, 16, downsample=True)
    # Block B: identity residual, dilated 3x3 (DeepLab-style), 64 -> 64.
    params_b = init_bottleneck(k_b, 64, 16, downsample=False)

    x = jax.random.normal(k_x, (2, 32, 16, 16), jnp.float32)  # NCHW input

    def forward(pa, pb, xin):
        # Convert to NHWC bf16 once; carry bf16 activations between blocks.
        h = jnp.transpose(xin, (0, 2, 3, 1)).astype(jnp.bfloat16)
        h = bottleneck_forward(h, pa, stride=2, dilation=1)
        h = bottleneck_forward(h, pb, stride=1, dilation=2)
        h = h.astype(jnp.float32)
        return jnp.transpose(h, (0, 3, 1, 2))

    fwd = jax.jit(forward)
    out = jax.block_until_ready(fwd(params_a, params_b, x))

    ref = ref_bottleneck(params_a, x, stride=2, dilation=1)
    ref = jax.block_until_ready(ref_bottleneck(params_b, ref, stride=1, dilation=2))

    assert out.shape == (2, 64, 8, 8), out.shape
    assert out.dtype == jnp.float32
    assert bool(jnp.all(jnp.isfinite(out)))
    max_err = float(jnp.max(jnp.abs(out - ref)))
    assert max_err < 1e-1, f"max abs error vs reference: {max_err}"
    print("KERNEL_OK")
</pallas_src>

<mosaic_0001>
module attributes {stable_mosaic.version = 11 : i64} {
  func.func @kernel(%arg0: i32, %arg1: i32, %arg2: i32, %arg3: memref<128x128xbf16, #tpu.memory_space<vmem>>, %arg4: memref<128x128xbf16, #tpu.memory_space<vmem>>, %arg5: memref<1x128xf32, #tpu.memory_space<vmem>>, %arg6: memref<1x128xf32, #tpu.memory_space<vmem>>, %arg7: memref<128x128xbf16, #tpu.memory_space<vmem>>, %arg8: memref<128x128xf32, #tpu.memory_space<vmem>>) attributes {dimension_semantics = [#tpu.dimension_semantics<parallel>, #tpu.dimension_semantics<parallel>, #tpu.dimension_semantics<arbitrary>], iteration_bounds = array<i64: 1, 1, 1>, scalar_prefetch = 0 : i64, scratch_operands = 1 : i64, tpu.core_type = #tpu.core_type<tc>, window_params = [{transform_indices = @transform_0, window_bounds = array<i64: 128, 128>}, {transform_indices = @transform_1, window_bounds = array<i64: 128, 128>}, {transform_indices = @transform_2, window_bounds = array<i64: 1, 128>}, {transform_indices = @transform_3, window_bounds = array<i64: 1, 128>}, {transform_indices = @transform_4, window_bounds = array<i64: 128, 128>}]} {
    %c0_i32 = arith.constant 0 : i32
    %0 = arith.cmpi eq, %arg2, %c0_i32 : i32
    %1 = arith.extui %0 : i1 to i32
    %c0_i32_0 = arith.constant 0 : i32
    %2 = arith.cmpi ne, %1, %c0_i32_0 : i32
    scf.if %2 {
      %cst_10 = arith.constant 0.000000e+00 : f32
      %12 = vector.broadcast %cst_10 : f32 to vector<128x128xf32>
      %c0_11 = arith.constant 0 : index
      %c0_12 = arith.constant 0 : index
      %13 = vector.load %arg8[%c0_11, %c0_12] : memref<128x128xf32, #tpu.memory_space<vmem>>, vector<128x128xf32>
      tpu.vector_store %arg8[%c0_11, %c0_12], %12 {strides = array<i32>} : memref<128x128xf32, #tpu.memory_space<vmem>>, vector<128x128xf32>,
    } else {
    }
    %c0 = arith.constant 0 : index
    %c0_1 = arith.constant 0 : index
    %3 = vector.load %arg8[%c0, %c0_1] : memref<128x128xf32, #tpu.memory_space<vmem>>, vector<128x128xf32>
    %c0_2 = arith.constant 0 : index
    %c0_3 = arith.constant 0 : index
    %4 = vector.load %arg3[%c0_2, %c0_3] : memref<128x128xbf16, #tpu.memory_space<vmem>>, vector<128x128xbf16>
    %c0_4 = arith.constant 0 : index
    %c0_5 = arith.constant 0 : index
    %5 = vector.load %arg4[%c0_4, %c0_5] : memref<128x128xbf16, #tpu.memory_space<vmem>>, vector<128x128xbf16>
    %cst = arith.constant dense<0.000000e+00> : vector<128x128xf32>
    %6 = tpu.matmul %4, %5, %cst {dimension_numbers = #tpu.dot_dimension_numbers<[1], [0], [0], [1], [0, 0, 1, 1], [], []>} : vector<128x128xbf16>, vector<128x128xbf16>, vector<128x128xf32> -> vector<128x128xf32>
    %7 = arith.addf %3, %6 : vector<128x128xf32>
    %c0_6 = arith.constant 0 : index
    %c0_7 = arith.constant 0 : index
    %8 = vector.load %arg8[%c0_6, %c0_7] : memref<128x128xf32, #tpu.memory_space<vmem>>, vector<128x128xf32>
    tpu.vector_store %arg8[%c0_6, %c0_7], %7 {strides = array<i32>} : memref<128x128xf32, #tpu.memory_space<vmem>>, vector<128x128xf32>,
    %c0_i32_8 = arith.constant 0 : i32
    %9 = arith.cmpi eq, %arg2, %c0_i32_8 : i32
    %10 = arith.extui %9 : i1 to i32
    %c0_i32_9 = arith.constant 0 : i32
    %11 = arith.cmpi ne, %10, %c0_i32_9 : i32
    scf.if %11 {
      %c0_10 = arith.constant 0 : index
      %c0_11 = arith.constant 0 : index
      %12 = vector.load %arg8[%c0_10, %c0_11] : memref<128x128xf32, #tpu.memory_space<vmem>>, vector<128x128xf32>
      %c0_12 = arith.constant 0 : index
      %c0_13 = arith.constant 0 : index
      %13 = vector.load %arg5[%c0_12, %c0_13] : memref<1x128xf32, #tpu.memory_space<vmem>>, vector<1x128xf32>
      %14 = vector.broadcast %13 : vector<1x128xf32> to vector<128x128xf32>
      %15 = arith.mulf %12, %14 : vector<128x128xf32>
      %c0_14 = arith.constant 0 : index
      %c0_15 = arith.constant 0 : index
      %16 = vector.load %arg6[%c0_14, %c0_15] : memref<1x128xf32, #tpu.memory_space<vmem>>, vector<1x128xf32>
      %17 = vector.broadcast %16 : vector<1x128xf32> to vector<128x128xf32>
      %18 = arith.addf %15, %17 : vector<128x128xf32>
      %cst_16 = arith.constant 0.000000e+00 : f32
      %19 = vector.broadcast %cst_16 : f32 to vector<128x128xf32>
      %20 = arith.maximumf %18, %19 : vector<128x128xf32>
      %21 = arith.truncf %20 : vector<128x128xf32> to vector<128x128xbf16>
      %c0_17 = arith.constant 0 : index
      %c0_18 = arith.constant 0 : index
      %22 = vector.load %arg7[%c0_17, %c0_18] : memref<128x128xbf16, #tpu.memory_space<vmem>>, vector<128x128xbf16>
      tpu.vector_store %arg7[%c0_17, %c0_18], %21 {strides = array<i32>} : memref<128x128xbf16, #tpu.memory_space<vmem>>, vector<128x128xbf16>,
    } else {
    }
    return
  }
  func.func @transform_0(%arg0: i32, %arg1: i32, %arg2: i32) -> (i32, i32) {
    %c0_i32 = arith.constant 0 : i32
    return %arg0, %arg2 : i32, i32
  }
  func.func @transform_1(%arg0: i32, %arg1: i32, %arg2: i32) -> (i32, i32) {
    %c0_i32 = arith.constant 0 : i32
    return %arg2, %arg1 : i32, i32
  }
  func.func @transform_2(%arg0: i32, %arg1: i32, %arg2: i32) -> (i32, i32) {
    %c0_i32 = arith.constant 0 : i32
    %c0_i32_0 = arith.constant 0 : i32
    return %c0_i32, %arg1 : i32, i32
  }
  func.func @transform_3(%arg0: i32, %arg1: i32, %arg2: i32) -> (i32, i32) {
    %c0_i32 = arith.constant 0 : i32
    %c0_i32_0 = arith.constant 0 : i32
    return %c0_i32, %arg1 : i32, i32
  }
  func.func @transform_4(%arg0: i32, %arg1: i32, %arg2: i32) -> (i32, i32) {
    %c0_i32 = arith.constant 0 : i32
    return %arg0, %arg1 : i32, i32
  }
}

module attributes {stable_mosaic.version = 11 : i64} {
  func.func @kernel(%arg0: i32, %arg1: i32, %arg2: i32, %arg3: memref<128x256xbf16, #tpu.memory_space<vmem>>, %arg4: memref<256x128xbf16, #tpu.memory_space<vmem>>, %arg5: memref<1x128xf32, #tpu.memory_space<vmem>>, %arg6: memref<1x128xf32, #tpu.memory_space<vmem>>, %arg7: memref<128x128xbf16, #tpu.memory_space<vmem>>, %arg8: memref<128x128xf32, #tpu.memory_space<vmem>>) attributes {dimension_semantics = [#tpu.dimension_semantics<parallel>, #tpu.dimension_semantics<parallel>, #tpu.dimension_semantics<arbitrary>], iteration_bounds = array<i64: 1, 1, 1>, scalar_prefetch = 0 : i64, scratch_operands = 1 : i64, tpu.core_type = #tpu.core_type<tc>, window_params = [{transform_indices = @transform_0, window_bounds = array<i64: 128, 256>}, {transform_indices = @transform_1, window_bounds = array<i64: 256, 128>}, {transform_indices = @transform_2, window_bounds = array<i64: 1, 128>}, {transform_indices = @transform_3, window_bounds = array<i64: 1, 128>}, {transform_indices = @transform_4, window_bounds = array<i64: 128, 128>}]} {
    %c0_i32 = arith.constant 0 : i32
    %0 = arith.cmpi eq, %arg2, %c0_i32 : i32
    %1 = arith.extui %0 : i1 to i32
    %c0_i32_0 = arith.constant 0 : i32
    %2 = arith.cmpi ne, %1, %c0_i32_0 : i32
    scf.if %2 {
      %cst_10 = arith.constant 0.000000e+00 : f32
      %12 = vector.broadcast %cst_10 : f32 to vector<128x128xf32>
      %c0_11 = arith.constant 0 : index
      %c0_12 = arith.constant 0 : index
      %13 = vector.load %arg8[%c0_11, %c0_12] : memref<128x128xf32, #tpu.memory_space<vmem>>, vector<128x128xf32>
      tpu.vector_store %arg8[%c0_11, %c0_12], %12 {strides = array<i32>} : memref<128x128xf32, #tpu.memory_space<vmem>>, vector<128x128xf32>,
    } else {
    }
    %c0 = arith.constant 0 : index
    %c0_1 = arith.constant 0 : index
    %3 = vector.load %arg8[%c0, %c0_1] : memref<128x128xf32, #tpu.memory_space<vmem>>, vector<128x128xf32>
    %c0_2 = arith.constant 0 : index
    %c0_3 = arith.constant 0 : index
    %4 = vector.load %arg3[%c0_2, %c0_3] : memref<128x256xbf16, #tpu.memory_space<vmem>>, vector<128x256xbf16>
    %c0_4 = arith.constant 0 : index
    %c0_5 = arith.constant 0 : index
    %5 = vector.load %arg4[%c0_4, %c0_5] : memref<256x128xbf16, #tpu.memory_space<vmem>>, vector<256x128xbf16>
    %cst = arith.constant dense<0.000000e+00> : vector<128x128xf32>
    %6 = tpu.matmul %4, %5, %cst {dimension_numbers = #tpu.dot_dimension_numbers<[1], [0], [0], [1], [0, 0, 1, 1], [], []>} : vector<128x256xbf16>, vector<256x128xbf16>, vector<128x128xf32> -> vector<128x128xf32>
    %7 = arith.addf %3, %6 : vector<128x128xf32>
    %c0_6 = arith.constant 0 : index
    %c0_7 = arith.constant 0 : index
    %8 = vector.load %arg8[%c0_6, %c0_7] : memref<128x128xf32, #tpu.memory_space<vmem>>, vector<128x128xf32>
    tpu.vector_store %arg8[%c0_6, %c0_7], %7 {strides = array<i32>} : memref<128x128xf32, #tpu.memory_space<vmem>>, vector<128x128xf32>,
    %c0_i32_8 = arith.constant 0 : i32
    %9 = arith.cmpi eq, %arg2, %c0_i32_8 : i32
    %10 = arith.extui %9 : i1 to i32
    %c0_i32_9 = arith.constant 0 : i32
    %11 = arith.cmpi ne, %10, %c0_i32_9 : i32
    scf.if %11 {
      %c0_10 = arith.constant 0 : index
      %c0_11 = arith.constant 0 : index
      %12 = vector.load %arg8[%c0_10, %c0_11] : memref<128x128xf32, #tpu.memory_space<vmem>>, vector<128x128xf32>
      %c0_12 = arith.constant 0 : index
      %c0_13 = arith.constant 0 : index
      %13 = vector.load %arg5[%c0_12, %c0_13] : memref<1x128xf32, #tpu.memory_space<vmem>>, vector<1x128xf32>
      %14 = vector.broadcast %13 : vector<1x128xf32> to vector<128x128xf32>
      %15 = arith.mulf %12, %14 : vector<128x128xf32>
      %c0_14 = arith.constant 0 : index
      %c0_15 = arith.constant 0 : index
      %16 = vector.load %arg6[%c0_14, %c0_15] : memref<1x128xf32, #tpu.memory_space<vmem>>, vector<1x128xf32>
      %17 = vector.broadcast %16 : vector<1x128xf32> to vector<128x128xf32>
      %18 = arith.addf %15, %17 : vector<128x128xf32>
      %cst_16 = arith.constant 0.000000e+00 : f32
      %19 = vector.broadcast %cst_16 : f32 to vector<128x128xf32>
      %20 = arith.maximumf %18, %19 : vector<128x128xf32>
      %21 = arith.truncf %20 : vector<128x128xf32> to vector<128x128xbf16>
      %c0_17 = arith.constant 0 : index
      %c0_18 = arith.constant 0 : index
      %22 = vector.load %arg7[%c0_17, %c0_18] : memref<128x128xbf16, #tpu.memory_space<vmem>>, vector<128x128xbf16>
      tpu.vector_store %arg7[%c0_17, %c0_18], %21 {strides = array<i32>} : memref<128x128xbf16, #tpu.memory_space<vmem>>, vector<128x128xbf16>,
    } else {
    }
    return
  }
  func.func @transform_0(%arg0: i32, %arg1: i32, %arg2: i32) -> (i32, i32) {
    %c0_i32 = arith.constant 0 : i32
    return %arg0, %arg2 : i32, i32
  }
  func.func @transform_1(%arg0: i32, %arg1: i32, %arg2: i32) -> (i32, i32) {
    %c0_i32 = arith.constant 0 : i32
    return %arg2, %arg1 : i32, i32
  }
  func.func @transform_2(%arg0: i32, %arg1: i32, %arg2: i32) -> (i32, i32) {
    %c0_i32 = arith.constant 0 : i32
    %c0_i32_0 = arith.constant 0 : i32
    return %c0_i32, %arg1 : i32, i32
  }
  func.func @transform_3(%arg0: i32, %arg1: i32, %arg2: i32) -> (i32, i32) {
    %c0_i32 = arith.constant 0 : i32
    %c0_i32_0 = arith.constant 0 : i32
    return %c0_i32, %arg1 : i32, i32
  }
  func.func @transform_4(%arg0: i32, %arg1: i32, %arg2: i32) -> (i32, i32) {
    %c0_i32 = arith.constant 0 : i32
    return %arg0, %arg1 : i32, i32
  }
}

module attributes {stable_mosaic.version = 11 : i64} {
  func.func @kernel(%arg0: i32, %arg1: i32, %arg2: i32, %arg3: memref<128x128xbf16, #tpu.memory_space<vmem>>, %arg4: memref<128x128xbf16, #tpu.memory_space<vmem>>, %arg5: memref<1x128xf32, #tpu.memory_space<vmem>>, %arg6: memref<1x128xf32, #tpu.memory_space<vmem>>, %arg7: memref<128x128xbf16, #tpu.memory_space<vmem>>, %arg8: memref<128x128xf32, #tpu.memory_space<vmem>>) attributes {dimension_semantics = [#tpu.dimension_semantics<parallel>, #tpu.dimension_semantics<parallel>, #tpu.dimension_semantics<arbitrary>], iteration_bounds = array<i64: 1, 1, 1>, scalar_prefetch = 0 : i64, scratch_operands = 1 : i64, tpu.core_type = #tpu.core_type<tc>, window_params = [{transform_indices = @transform_0, window_bounds = array<i64: 128, 128>}, {transform_indices = @transform_1, window_bounds = array<i64: 128, 128>}, {transform_indices = @transform_2, window_bounds = array<i64: 1, 128>}, {transform_indices = @transform_3, window_bounds = array<i64: 1, 128>}, {transform_indices = @transform_4, window_bounds = array<i64: 128, 128>}]} {
    %c0_i32 = arith.constant 0 : i32
    %0 = arith.cmpi eq, %arg2, %c0_i32 : i32
    %1 = arith.extui %0 : i1 to i32
    %c0_i32_0 = arith.constant 0 : i32
    %2 = arith.cmpi ne, %1, %c0_i32_0 : i32
    scf.if %2 {
      %cst_10 = arith.constant 0.000000e+00 : f32
      %12 = vector.broadcast %cst_10 : f32 to vector<128x128xf32>
      %c0_11 = arith.constant 0 : index
      %c0_12 = arith.constant 0 : index
      %13 = vector.load %arg8[%c0_11, %c0_12] : memref<128x128xf32, #tpu.memory_space<vmem>>, vector<128x128xf32>
      tpu.vector_store %arg8[%c0_11, %c0_12], %12 {strides = array<i32>} : memref<128x128xf32, #tpu.memory_space<vmem>>, vector<128x128xf32>,
    } else {
    }
    %c0 = arith.constant 0 : index
    %c0_1 = arith.constant 0 : index
    %3 = vector.load %arg8[%c0, %c0_1] : memref<128x128xf32, #tpu.memory_space<vmem>>, vector<128x128xf32>
    %c0_2 = arith.constant 0 : index
    %c0_3 = arith.constant 0 : index
    %4 = vector.load %arg3[%c0_2, %c0_3] : memref<128x128xbf16, #tpu.memory_space<vmem>>, vector<128x128xbf16>
    %c0_4 = arith.constant 0 : index
    %c0_5 = arith.constant 0 : index
    %5 = vector.load %arg4[%c0_4, %c0_5] : memref<128x128xbf16, #tpu.memory_space<vmem>>, vector<128x128xbf16>
    %cst = arith.constant dense<0.000000e+00> : vector<128x128xf32>
    %6 = tpu.matmul %4, %5, %cst {dimension_numbers = #tpu.dot_dimension_numbers<[1], [0], [0], [1], [0, 0, 1, 1], [], []>} : vector<128x128xbf16>, vector<128x128xbf16>, vector<128x128xf32> -> vector<128x128xf32>
    %7 = arith.addf %3, %6 : vector<128x128xf32>
    %c0_6 = arith.constant 0 : index
    %c0_7 = arith.constant 0 : index
    %8 = vector.load %arg8[%c0_6, %c0_7] : memref<128x128xf32, #tpu.memory_space<vmem>>, vector<128x128xf32>
    tpu.vector_store %arg8[%c0_6, %c0_7], %7 {strides = array<i32>} : memref<128x128xf32, #tpu.memory_space<vmem>>, vector<128x128xf32>,
    %c0_i32_8 = arith.constant 0 : i32
    %9 = arith.cmpi eq, %arg2, %c0_i32_8 : i32
    %10 = arith.extui %9 : i1 to i32
    %c0_i32_9 = arith.constant 0 : i32
    %11 = arith.cmpi ne, %10, %c0_i32_9 : i32
    scf.if %11 {
      %c0_10 = arith.constant 0 : index
      %c0_11 = arith.constant 0 : index
      %12 = vector.load %arg8[%c0_10, %c0_11] : memref<128x128xf32, #tpu.memory_space<vmem>>, vector<128x128xf32>
      %c0_12 = arith.constant 0 : index
      %c0_13 = arith.constant 0 : index
      %13 = vector.load %arg5[%c0_12, %c0_13] : memref<1x128xf32, #tpu.memory_space<vmem>>, vector<1x128xf32>
      %14 = vector.broadcast %13 : vector<1x128xf32> to vector<128x128xf32>
      %15 = arith.mulf %12, %14 : vector<128x128xf32>
      %c0_14 = arith.constant 0 : index
      %c0_15 = arith.constant 0 : index
      %16 = vector.load %arg6[%c0_14, %c0_15] : memref<1x128xf32, #tpu.memory_space<vmem>>, vector<1x128xf32>
      %17 = vector.broadcast %16 : vector<1x128xf32> to vector<128x128xf32>
      %18 = arith.addf %15, %17 : vector<128x128xf32>
      %19 = arith.truncf %18 : vector<128x128xf32> to vector<128x128xbf16>
      %c0_16 = arith.constant 0 : index
      %c0_17 = arith.constant 0 : index
      %20 = vector.load %arg7[%c0_16, %c0_17] : memref<128x128xbf16, #tpu.memory_space<vmem>>, vector<128x128xbf16>
      tpu.vector_store %arg7[%c0_16, %c0_17], %19 {strides = array<i32>} : memref<128x128xbf16, #tpu.memory_space<vmem>>, vector<128x128xbf16>,
    } else {
    }
    return
  }
  func.func @transform_0(%arg0: i32, %arg1: i32, %arg2: i32) -> (i32, i32) {
    %c0_i32 = arith.constant 0 : i32
    return %arg0, %arg2 : i32, i32
  }
  func.func @transform_1(%arg0: i32, %arg1: i32, %arg2: i32) -> (i32, i32) {
    %c0_i32 = arith.constant 0 : i32
    return %arg2, %arg1 : i32, i32
  }
  func.func @transform_2(%arg0: i32, %arg1: i32, %arg2: i32) -> (i32, i32) {
    %c0_i32 = arith.constant 0 : i32
    %c0_i32_0 = arith.constant 0 : i32
    return %c0_i32, %arg1 : i32, i32
  }
  func.func @transform_3(%arg0: i32, %arg1: i32, %arg2: i32) -> (i32, i32) {
    %c0_i32 = arith.constant 0 : i32
    %c0_i32_0 = arith.constant 0 : i32
    return %c0_i32, %arg1 : i32, i32
  }
  func.func @transform_4(%arg0: i32, %arg1: i32, %arg2: i32) -> (i32, i32) {
    %c0_i32 = arith.constant 0 : i32
    return %arg0, %arg1 : i32, i32
  }
}

module attributes {stable_mosaic.version = 11 : i64} {
  func.func @kernel(%arg0: i32, %arg1: i32, %arg2: i32, %arg3: memref<128x128xbf16, #tpu.memory_space<vmem>>, %arg4: memref<128x128xbf16, #tpu.memory_space<vmem>>, %arg5: memref<1x128xf32, #tpu.memory_space<vmem>>, %arg6: memref<1x128xf32, #tpu.memory_space<vmem>>, %arg7: memref<128x128xbf16, #tpu.memory_space<vmem>>, %arg8: memref<128x128xbf16, #tpu.memory_space<vmem>>, %arg9: memref<128x128xf32, #tpu.memory_space<vmem>>) attributes {dimension_semantics = [#tpu.dimension_semantics<parallel>, #tpu.dimension_semantics<parallel>, #tpu.dimension_semantics<arbitrary>], iteration_bounds = array<i64: 1, 1, 1>, scalar_prefetch = 0 : i64, scratch_operands = 1 : i64, tpu.core_type = #tpu.core_type<tc>, window_params = [{transform_indices = @transform_0, window_bounds = array<i64: 128, 128>}, {transform_indices = @transform_1, window_bounds = array<i64: 128, 128>}, {transform_indices = @transform_2, window_bounds = array<i64: 1, 128>}, {transform_indices = @transform_3, window_bounds = array<i64: 1, 128>}, {transform_indices = @transform_4, window_bounds = array<i64: 128, 128>}, {transform_indices = @transform_5, window_bounds = array<i64: 128, 128>}]} {
    %c0_i32 = arith.constant 0 : i32
    %0 = arith.cmpi eq, %arg2, %c0_i32 : i32
    %1 = arith.extui %0 : i1 to i32
    %c0_i32_0 = arith.constant 0 : i32
    %2 = arith.cmpi ne, %1, %c0_i32_0 : i32
    scf.if %2 {
      %cst_10 = arith.constant 0.000000e+00 : f32
      %12 = vector.broadcast %cst_10 : f32 to vector<128x128xf32>
      %c0_11 = arith.constant 0 : index
      %c0_12 = arith.constant 0 : index
      %13 = vector.load %arg9[%c0_11, %c0_12] : memref<128x128xf32, #tpu.memory_space<vmem>>, vector<128x128xf32>
      tpu.vector_store %arg9[%c0_11, %c0_12], %12 {strides = array<i32>} : memref<128x128xf32, #tpu.memory_space<vmem>>, vector<128x128xf32>,
    } else {
    }
    %c0 = arith.constant 0 : index
    %c0_1 = arith.constant 0 : index
    %3 = vector.load %arg9[%c0, %c0_1] : memref<128x128xf32, #tpu.memory_space<vmem>>, vector<128x128xf32>
    %c0_2 = arith.constant 0 : index
    %c0_3 = arith.constant 0 : index
    %4 = vector.load %arg3[%c0_2, %c0_3] : memref<128x128xbf16, #tpu.memory_space<vmem>>, vector<128x128xbf16>
    %c0_4 = arith.constant 0 : index
    %c0_5 = arith.constant 0 : index
    %5 = vector.load %arg4[%c0_4, %c0_5] : memref<128x128xbf16, #tpu.memory_space<vmem>>, vector<128x128xbf16>
    %cst = arith.constant dense<0.000000e+00> : vector<128x128xf32>
    %6 = tpu.matmul %4, %5, %cst {dimension_numbers = #tpu.dot_dimension_numbers<[1], [0], [0], [1], [0, 0, 1, 1], [], []>} : vector<128x128xbf16>, vector<128x128xbf16>, vector<128x128xf32> -> vector<128x128xf32>
    %7 = arith.addf %3, %6 : vector<128x128xf32>
    %c0_6 = arith.constant 0 : index
    %c0_7 = arith.constant 0 : index
    %8 = vector.load %arg9[%c0_6, %c0_7] : memref<128x128xf32, #tpu.memory_space<vmem>>, vector<128x128xf32>
    tpu.vector_store %arg9[%c0_6, %c0_7], %7 {strides = array<i32>} : memref<128x128xf32, #tpu.memory_space<vmem>>, vector<128x128xf32>,
    %c0_i32_8 = arith.constant 0 : i32
    %9 = arith.cmpi eq, %arg2, %c0_i32_8 : i32
    %10 = arith.extui %9 : i1 to i32
    %c0_i32_9 = arith.constant 0 : i32
    %11 = arith.cmpi ne, %10, %c0_i32_9 : i32
    scf.if %11 {
      %c0_10 = arith.constant 0 : index
      %c0_11 = arith.constant 0 : index
      %12 = vector.load %arg9[%c0_10, %c0_11] : memref<128x128xf32, #tpu.memory_space<vmem>>, vector<128x128xf32>
      %c0_12 = arith.constant 0 : index
      %c0_13 = arith.constant 0 : index
      %13 = vector.load %arg5[%c0_12, %c0_13] : memref<1x128xf32, #tpu.memory_space<vmem>>, vector<1x128xf32>
      %14 = vector.broadcast %13 : vector<1x128xf32> to vector<128x128xf32>
      %15 = arith.mulf %12, %14 : vector<128x128xf32>
      %c0_14 = arith.constant 0 : index
      %c0_15 = arith.constant 0 : index
      %16 = vector.load %arg6[%c0_14, %c0_15] : memref<1x128xf32, #tpu.memory_space<vmem>>, vector<1x128xf32>
      %17 = vector.broadcast %16 : vector<1x128xf32> to vector<128x128xf32>
      %18 = arith.addf %15, %17 : vector<128x128xf32>
      %c0_16 = arith.constant 0 : index
      %c0_17 = arith.constant 0 : index
      %19 = vector.load %arg7[%c0_16, %c0_17] : memref<128x128xbf16, #tpu.memory_space<vmem>>, vector<128x128xbf16>
      %20 = arith.extf %19 : vector<128x128xbf16> to vector<128x128xf32>
      %21 = arith.addf %18, %20 : vector<128x128xf32>
      %cst_18 = arith.constant 0.000000e+00 : f32
      %22 = vector.broadcast %cst_18 : f32 to vector<128x128xf32>
      %23 = arith.maximumf %21, %22 : vector<128x128xf32>
      %24 = arith.truncf %23 : vector<128x128xf32> to vector<128x128xbf16>
      %c0_19 = arith.constant 0 : index
      %c0_20 = arith.constant 0 : index
      %25 = vector.load %arg8[%c0_19, %c0_20] : memref<128x128xbf16, #tpu.memory_space<vmem>>, vector<128x128xbf16>
      tpu.vector_store %arg8[%c0_19, %c0_20], %24 {strides = array<i32>} : memref<128x128xbf16, #tpu.memory_space<vmem>>, vector<128x128xbf16>,
    } else {
    }
    return
  }
  func.func @transform_0(%arg0: i32, %arg1: i32, %arg2: i32) -> (i32, i32) {
    %c0_i32 = arith.constant 0 : i32
    return %arg0, %arg2 : i32, i32
  }
  func.func @transform_1(%arg0: i32, %arg1: i32, %arg2: i32) -> (i32, i32) {
    %c0_i32 = arith.constant 0 : i32
    return %arg2, %arg1 : i32, i32
  }
  func.func @transform_2(%arg0: i32, %arg1: i32, %arg2: i32) -> (i32, i32) {
    %c0_i32 = arith.constant 0 : i32
    %c0_i32_0 = arith.constant 0 : i32
    return %c0_i32, %arg1 : i32, i32
  }
  func.func @transform_3(%arg0: i32, %arg1: i32, %arg2: i32) -> (i32, i32) {
    %c0_i32 = arith.constant 0 : i32
    %c0_i32_0 = arith.constant 0 : i32
    return %c0_i32, %arg1 : i32, i32
  }
  func.func @transform_4(%arg0: i32, %arg1: i32, %arg2: i32) -> (i32, i32) {
    %c0_i32 = arith.constant 0 : i32
    return %arg0, %arg1 : i32, i32
  }
  func.func @transform_5(%arg0: i32, %arg1: i32, %arg2: i32) -> (i32, i32) {
    %c0_i32 = arith.constant 0 : i32
    return %arg0, %arg1 : i32, i32
  }
}

</mosaic_0001>

<llo_original>
// kernel: forward.7
$region0: #{forward.7}
  #allocation0 [shape = 'u32[]', space=smem, size = 0x4, offset = 0x4, fixed_abs, tag = 'smem constant byte address 0x4 - core index']
  #allocation1 [shape = 'u32[144,128]{1,0:T(1,128)}', space=vmem, size = 0x12000, scoped, tag = 'internal scratch']
  #allocation2 [shape = 'f32[128,128]{1,0:T(8,128)}', space=vmem, size = 0x10000, scoped, tag = 'scratch operand']
  %s0 = inlined_call_operand.vmem [shape: bf16[128,128], index: 0, kind: input, shape index: {}]
  %s1 = inlined_call_operand.vmem [shape: bf16[128,128], index: 1, kind: input, shape index: {}]
  %s2 = inlined_call_operand.vmem [shape: f32[1,128], index: 2, kind: input, shape index: {}]
  %s3 = inlined_call_operand.vmem [shape: f32[1,128], index: 3, kind: input, shape index: {}]
  %s4 = inlined_call_operand.vmem [shape: bf16[128,128], index: 4, kind: output, shape index: {}]
  %s5 = sld [smem:[#allocation0]]
  $region34: #{forward.7} parent=0
    _
  %s7 = ssub.s32 1, %s5
  %s8 = scalar_select 0, %s7, %s5
  // Predicated region
  $region2: #{forward.7} parent=0 // pred_check
    _
  $region3: #{forward.7} parent=0 // pred_check_branch
    %10 = sbr.rel (0) target = $region5
  $region4: #{forward.7} parent=0 // pred_region
    _
  $region5: #{forward.7} parent=0 // pred_fallthru
    _
  // Predicated region
  $region6: #{forward.7} parent=0 // pred_check
    _
  $region7: #{forward.7} parent=0 // pred_check_branch
    %12 = sbr.rel (0) target = $region9
  $region8: #{forward.7} parent=0 // pred_region
    _
  $region9: #{forward.7} parent=0 // pred_fallthru
    _
  // Predicated region
  $region10: #{forward.7} parent=0 // pred_check
    _
  $region11: #{forward.7} parent=0 // pred_check_branch
    %14 = sbr.rel (0) target = $region13
  $region12: #{forward.7} parent=0 // pred_region
    _
  $region13: #{forward.7} parent=0 // pred_fallthru
    _
  // Predicated region
  $region14: #{forward.7} parent=0 // pred_check
    _
  $region15: #{forward.7} parent=0 // pred_check_branch
    %16 = sbr.rel (0) target = $region17
  $region16: #{forward.7} parent=0 // pred_region
    _
  $region17: #{forward.7} parent=0 // pred_fallthru
    _
  %p18 = scmp.eq.s32.totalorder 0, 0
  // Predicated region
  $region18: #{forward.7} parent=0 // pred_check
    %p19 = pneg %p18
  $region19: #{forward.7} parent=0 // pred_check_branch
    %21 = sbr.rel (%p19) target = $region21
  $region20: #{forward.7} parent=0 // pred_region
    %22 = vst [vmem:[#allocation2] sm:$0xff] 0.0
    %23 = vst [vmem:[#allocation2 + $0x8] sm:$0xff] 0.0
    %24 = vst [vmem:[#allocation2 + $0x10] sm:$0xff] 0.0
    %25 = vst [vmem:[#allocation2 + $0x18] sm:$0xff] 0.0
    %26 = vst [vmem:[#allocation2 + $0x20] sm:$0xff] 0.0
    %27 = vst [vmem:[#allocation2 + $0x28] sm:$0xff] 0.0
    %28 = vst [vmem:[#allocation2 + $0x30] sm:$0xff] 0.0
    %29 = vst [vmem:[#allocation2 + $0x38] sm:$0xff] 0.0
    %30 = vst [vmem:[#allocation2 + $0x40] sm:$0xff] 0.0
    %31 = vst [vmem:[#allocation2 + $0x48] sm:$0xff] 0.0
    %32 = vst [vmem:[#allocation2 + $0x50] sm:$0xff] 0.0
    %33 = vst [vmem:[#allocation2 + $0x58] sm:$0xff] 0.0
    %34 = vst [vmem:[#allocation2 + $0x60] sm:$0xff] 0.0
    %35 = vst [vmem:[#allocation2 + $0x68] sm:$0xff] 0.0
    %36 = vst [vmem:[#allocation2 + $0x70] sm:$0xff] 0.0
    %37 = vst [vmem:[#allocation2 + $0x78] sm:$0xff] 0.0
  $region21: #{forward.7} parent=0 // pred_fallthru
    _
  %v38 = vld [vmem:[#allocation2] sm:$0xff]
  %v39 = vld [vmem:[#allocation2 + $0x8] sm:$0xff]
  %v40 = vld [vmem:[#allocation2 + $0x10] sm:$0xff]
  %v41 = vld [vmem:[#allocation2 + $0x18] sm:$0xff]
  %v42 = vld [vmem:[#allocation2 + $0x20] sm:$0xff]
  %v43 = vld [vmem:[#allocation2 + $0x28] sm:$0xff]
  %v44 = vld [vmem:[#allocation2 + $0x30] sm:$0xff]
  %v45 = vld [vmem:[#allocation2 + $0x38] sm:$0xff]
  %v46 = vld [vmem:[#allocation2 + $0x40] sm:$0xff]
  %v47 = vld [vmem:[#allocation2 + $0x48] sm:$0xff]
  %v48 = vld [vmem:[#allocation2 + $0x50] sm:$0xff]
  %v49 = vld [vmem:[#allocation2 + $0x58] sm:$0xff]
  %v50 = vld [vmem:[#allocation2 + $0x60] sm:$0xff]
  %v51 = vld [vmem:[#allocation2 + $0x68] sm:$0xff]
  %v52 = vld [vmem:[#allocation2 + $0x70] sm:$0xff]
  %v53 = vld [vmem:[#allocation2 + $0x78] sm:$0xff]
  %v54 = vld [vmem:[%s0] sm:$0xf]
  %v55 = vld [vmem:[%s0 + $0x4] sm:$0xf]
  %v56 = vld [vmem:[%s0 + $0x8] sm:$0xf]
  %v57 = vld [vmem:[%s0 + $0xc] sm:$0xf]
  %v58 = vld [vmem:[%s0 + $0x10] sm:$0xf]
  %v59 = vld [vmem:[%s0 + $0x14] sm:$0xf]
  %v60 = vld [vmem:[%s0 + $0x18] sm:$0xf]
  %v61 = vld [vmem:[%s0 + $0x1c] sm:$0xf]
  %v62 = vld [vmem:[%s0 + $0x20] sm:$0xf]
  %v63 = vld [vmem:[%s0 + $0x24] sm:$0xf]
  %v64 = vld [vmem:[%s0 + $0x28] sm:$0xf]
  %v65 = vld [vmem:[%s0 + $0x2c] sm:$0xf]
  %v66 = vld [vmem:[%s0 + $0x30] sm:$0xf]
  %v67 = vld [vmem:[%s0 + $0x34] sm:$0xf]
  %v68 = vld [vmem:[%s0 + $0x38] sm:$0xf]
  %v69 = vld [vmem:[%s0 + $0x3c] sm:$0xf]
  %v70 = vld [vmem:[%s1] sm:$0xf]
  %v71 = vld [vmem:[%s1 + $0x4] sm:$0xf]
  %v72 = vld [vmem:[%s1 + $0x8] sm:$0xf]
  %v73 = vld [vmem:[%s1 + $0xc] sm:$0xf]
  %v74 = vld [vmem:[%s1 + $0x10] sm:$0xf]
  %v75 = vld [vmem:[%s1 + $0x14] sm:$0xf]
  %v76 = vld [vmem:[%s1 + $0x18] sm:$0xf]
  %v77 = vld [vmem:[%s1 + $0x1c] sm:$0xf]
  %v78 = vld [vmem:[%s1 + $0x20] sm:$0xf]
  %v79 = vld [vmem:[%s1 + $0x24] sm:$0xf]
  %v80 = vld [vmem:[%s1 + $0x28] sm:$0xf]
  %v81 = vld [vmem:[%s1 + $0x2c] sm:$0xf]
  %v82 = vld [vmem:[%s1 + $0x30] sm:$0xf]
  %v83 = vld [vmem:[%s1 + $0x34] sm:$0xf]
  %v84 = vld [vmem:[%s1 + $0x38] sm:$0xf]
  %v85 = vld [vmem:[%s1 + $0x3c] sm:$0xf]
  %v102 = vunpack.c.l.b16 %v54
  %v103 = vunpack.c.l.b16 %v55
  %v104 = vunpack.c.l.b16 %v56
  %v105 = vunpack.c.l.b16 %v57
  %v106 = vunpack.c.l.b16 %v58
  %v107 = vunpack.c.l.b16 %v59
  %v108 = vunpack.c.l.b16 %v60
  %v109 = vunpack.c.l.b16 %v61
  %v110 = vunpack.c.l.b16 %v62
  %v111 = vunpack.c.l.b16 %v63
  %v112 = vunpack.c.l.b16 %v64
  %v113 = vunpack.c.l.b16 %v65
  %v114 = vunpack.c.l.b16 %v66
  %v115 = vunpack.c.l.b16 %v67
  %v116 = vunpack.c.l.b16 %v68
  %v117 = vunpack.c.l.b16 %v69
  %v118 = vpack.c.b16 %v103, %v102
  %v119 = vpack.c.b16 %v105, %v104
  %v120 = vpack.c.b16 %v107, %v106
  %v121 = vpack.c.b16 %v109, %v108
  %v122 = vpack.c.b16 %v111, %v110
  %v123 = vpack.c.b16 %v113, %v112
  %v124 = vpack.c.b16 %v115, %v114
  %v125 = vpack.c.b16 %v117, %v116
  %v150 = vunpack.c.l.b16 %v70
  %v151 = vunpack.c.l.b16 %v71
  %v152 = vunpack.c.l.b16 %v72
  %v153 = vunpack.c.l.b16 %v73
  %v154 = vunpack.c.l.b16 %v74
  %v155 = vunpack.c.l.b16 %v75
  %v156 = vunpack.c.l.b16 %v76
  %v157 = vunpack.c.l.b16 %v77
  %v158 = vunpack.c.l.b16 %v78
  %v159 = vunpack.c.l.b16 %v79
  %v160 = vunpack.c.l.b16 %v80
  %v161 = vunpack.c.l.b16 %v81
  %v162 = vunpack.c.l.b16 %v82
  %v163 = vunpack.c.l.b16 %v83
  %v164 = vunpack.c.l.b16 %v84
  %v165 = vunpack.c.l.b16 %v85
  %v166 = vpack.c.b16 %v151, %v150
  %v167 = vpack.c.b16 %v153, %v152
  %v168 = vpack.c.b16 %v155, %v154
  %v169 = vpack.c.b16 %v157, %v156
  %v170 = vpack.c.b16 %v159, %v158
  %v171 = vpack.c.b16 %v161, %v160
  %v172 = vpack.c.b16 %v163, %v162
  %v173 = vpack.c.b16 %v165, %v164
  %182 = vmatprep.subr.bf16.mxu0 0
  %183 = vmatpush1.bf16.msra.mxu0 %v173
  %184 = vmatprep.subr.bf16.mxu0 0
  %185 = vmatpush1.bf16.msra.mxu0 %v172
  %186 = vmatprep.subr.bf16.mxu0 0
  %187 = vmatpush1.bf16.msra.mxu0 %v171
  %188 = vmatprep.subr.bf16.mxu0 0
  %189 = vmatpush1.bf16.msra.mxu0 %v170
  %190 = vmatprep.subr.bf16.mxu0 0
  %191 = vmatpush1.bf16.msra.mxu0 %v169
  %192 = vmatprep.subr.bf16.mxu0 0
  %193 = vmatpush1.bf16.msra.mxu0 %v168
  %194 = vmatprep.subr.bf16.mxu0 0
  %195 = vmatpush1.bf16.msra.mxu0 %v167
  %196 = vmatprep.subr.bf16.mxu0 0
  %197 = vmatpush1.bf16.msra.mxu0 %v166
  %198 = vmatprep.subr.bf16.mxu0 0
  %199 = vmatpush2.bf16.msra.mxu0 0
  %200 = vmatprep.subr.bf16.mxu0 0
  %201 = vmatpush2.bf16.msra.mxu0 0
  %202 = vmatprep.subr.bf16.mxu0 0
  %203 = vmatpush2.bf16.msra.mxu0 0
  %204 = vmatprep.subr.bf16.mxu0 0
  %205 = vmatpush2.bf16.msra.mxu0 0
  %206 = vmatprep.subr.bf16.mxu0 0
  %207 = vmatpush2.bf16.msra.mxu0 0
  %208 = vmatprep.subr.bf16.mxu0 0
  %209 = vmatpush2.bf16.msra.mxu0 0
  %210 = vmatprep.subr.bf16.mxu0 0
  %211 = vmatpush2.bf16.msra.mxu0 0
  %212 = vmatprep.subr.bf16.mxu0 0
  %213 = vmatpush2.bf16.msra.mxu0 0
  %214 = vmatprep.mubr.bf16.mxu0 0
  %215 = vmatmul.mubr.bf16.gmra.mxu0 %v118
  %v216 = vpop.f32.mrf.mxu0
  %v217 = vadd.f32 0.0, %v216
  %v218 = vpop.f32.mrf.mxu0
  %v219 = vpop.f32.mrf.mxu0
  %v220 = vadd.f32 0.0, %v219
  %v221 = vpop.f32.mrf.mxu0
  %222 = vmatprep.mubr.bf16.mxu0 0
  %223 = vmatmul.mubr.bf16.gmra.mxu0 %v119
  %v224 = vpop.f32.mrf.mxu0
  %v225 = vadd.f32 0.0, %v224
  %v226 = vpop.f32.mrf.mxu0
  %v227 = vpop.f32.mrf.mxu0
  %v228 = vadd.f32 0.0, %v227
  %v229 = vpop.f32.mrf.mxu0
  %230 = vmatprep.mubr.bf16.mxu0 0
  %231 = vmatmul.mubr.bf16.gmra.mxu0 %v120
  %v232 = vpop.f32.mrf.mxu0
  %v233 = vadd.f32 0.0, %v232
  %v234 = vpop.f32.mrf.mxu0
  %v235 = vpop.f32.mrf.mxu0
  %v236 = vadd.f32 0.0, %v235
  %v237 = vpop.f32.mrf.mxu0
  %238 = vmatprep.mubr.bf16.mxu0 0
  %239 = vmatmul.mubr.bf16.gmra.mxu0 %v121
  %v240 = vpop.f32.mrf.mxu0
  %v241 = vadd.f32 0.0, %v240
  %v242 = vpop.f32.mrf.mxu0
  %v243 = vpop.f32.mrf.mxu0
  %v244 = vadd.f32 0.0, %v243
  %v245 = vpop.f32.mrf.mxu0
  %246 = vmatprep.mubr.bf16.mxu0 0
  %247 = vmatmul.mubr.bf16.gmra.mxu0 %v122
  %v248 = vpop.f32.mrf.mxu0
  %v249 = vadd.f32 0.0, %v248
  %v250 = vpop.f32.mrf.mxu0
  %v251 = vpop.f32.mrf.mxu0
  %v252 = vadd.f32 0.0, %v251
  %v253 = vpop.f32.mrf.mxu0
  %254 = vmatprep.mubr.bf16.mxu0 0
  %255 = vmatmul.mubr.bf16.gmra.mxu0 %v123
  %v256 = vpop.f32.mrf.mxu0
  %v257 = vadd.f32 0.0, %v256
  %v258 = vpop.f32.mrf.mxu0
  %v259 = vpop.f32.mrf.mxu0
  %v260 = vadd.f32 0.0, %v259
  %v261 = vpop.f32.mrf.mxu0
  %262 = vmatprep.mubr.bf16.mxu0 0
  %263 = vmatmul.mubr.bf16.gmra.mxu0 %v124
  %v264 = vpop.f32.mrf.mxu0
  %v265 = vadd.f32 0.0, %v264
  %v266 = vpop.f32.mrf.mxu0
  %v267 = vpop.f32.mrf.mxu0
  %v268 = vadd.f32 0.0, %v267
  %v269 = vpop.f32.mrf.mxu0
  %270 = vmatprep.mubr.bf16.mxu0 0
  %271 = vmatmul.mubr.bf16.gmra.mxu0 %v125
  %v272 = vpop.f32.mrf.mxu0
  %v273 = vadd.f32 0.0, %v272
  %v274 = vpop.f32.mrf.mxu0
  %v275 = vpop.f32.mrf.mxu0
  %v276 = vadd.f32 0.0, %v275
  %v277 = vpop.f32.mrf.mxu0
  %278 = vdwg.mxu0
  %v279 = vadd.f32 %v38, %v217
  %v280 = vadd.f32 %v39, %v220
  %v281 = vadd.f32 %v40, %v225
  %v282 = vadd.f32 %v41, %v228
  %v283 = vadd.f32 %v42, %v233
  %v284 = vadd.f32 %v43, %v236
  %v285 = vadd.f32 %v44, %v241
  %v286 = vadd.f32 %v45, %v244
  %v287 = vadd.f32 %v46, %v249
  %v288 = vadd.f32 %v47, %v252
  %v289 = vadd.f32 %v48, %v257
  %v290 = vadd.f32 %v49, %v260
  %v291 = vadd.f32 %v50, %v265
  %v292 = vadd.f32 %v51, %v268
  %v293 = vadd.f32 %v52, %v273
  %v294 = vadd.f32 %v53, %v276
  %295 = vst [vmem:[#allocation2] sm:$0xff] %v279
  %296 = vst [vmem:[#allocation2 + $0x8] sm:$0xff] %v280
  %297 = vst [vmem:[#allocation2 + $0x10] sm:$0xff] %v281
  %298 = vst [vmem:[#allocation2 + $0x18] sm:$0xff] %v282
  %299 = vst [vmem:[#allocation2 + $0x20] sm:$0xff] %v283
  %300 = vst [vmem:[#allocation2 + $0x28] sm:$0xff] %v284
  %301 = vst [vmem:[#allocation2 + $0x30] sm:$0xff] %v285
  %302 = vst [vmem:[#allocation2 + $0x38] sm:$0xff] %v286
  %303 = vst [vmem:[#allocation2 + $0x40] sm:$0xff] %v287
  %304 = vst [vmem:[#allocation2 + $0x48] sm:$0xff] %v288
  %305 = vst [vmem:[#allocation2 + $0x50] sm:$0xff] %v289
  %306 = vst [vmem:[#allocation2 + $0x58] sm:$0xff] %v290
  %307 = vst [vmem:[#allocation2 + $0x60] sm:$0xff] %v291
  %308 = vst [vmem:[#allocation2 + $0x68] sm:$0xff] %v292
  %309 = vst [vmem:[#allocation2 + $0x70] sm:$0xff] %v293
  %310 = vst [vmem:[#allocation2 + $0x78] sm:$0xff] %v294
  // Predicated region
  $region22: #{forward.7} parent=0 // pred_check
    %p311 = pneg %p18
  $region23: #{forward.7} parent=0 // pred_check_branch
    %313 = sbr.rel (%p311) target = $region25
  $region24: #{forward.7} parent=0 // pred_region
    %v314 = vld [vmem:[#allocation2] sm:$0xff]
    %v315 = vld [vmem:[#allocation2 + $0x8] sm:$0xff]
    %v316 = vld [vmem:[#allocation2 + $0x10] sm:$0xff]
    %v317 = vld [vmem:[#allocation2 + $0x18] sm:$0xff]
    %v318 = vld [vmem:[#allocation2 + $0x20] sm:$0xff]
    %v319 = vld [vmem:[#allocation2 + $0x28] sm:$0xff]
    %v320 = vld [vmem:[#allocation2 + $0x30] sm:$0xff]
    %v321 = vld [vmem:[#allocation2 + $0x38] sm:$0xff]
    %v322 = vld [vmem:[#allocation2 + $0x40] sm:$0xff]
    %v323 = vld [vmem:[#allocation2 + $0x48] sm:$0xff]
    %v324 = vld [vmem:[#allocation2 + $0x50] sm:$0xff]
    %v325 = vld [vmem:[#allocation2 + $0x58] sm:$0xff]
    %v326 = vld [vmem:[#allocation2 + $0x60] sm:$0xff]
    %v327 = vld [vmem:[#allocation2 + $0x68] sm:$0xff]
    %v328 = vld [vmem:[#allocation2 + $0x70] sm:$0xff]
    %v329 = vld [vmem:[#allocation2 + $0x78] sm:$0xff]
    %v330 = vld [vmem:[%s2] sm:$0x1]
    %v332 = vlaneseq
    %v333 = vshrl.u32 %v332, 7
    %v334 = vsub.s32 0, %v333
    %v335 = vrot.slane %v330, %v334
    %v337 = vmul.f32 %v314, %v335
    %v338 = vmul.f32 %v315, %v335
    %v339 = vmul.f32 %v316, %v335
    %v340 = vmul.f32 %v317, %v335
    %v341 = vmul.f32 %v318, %v335
    %v342 = vmul.f32 %v319, %v335
    %v343 = vmul.f32 %v320, %v335
    %v344 = vmul.f32 %v321, %v335
    %v345 = vmul.f32 %v322, %v335
    %v346 = vmul.f32 %v323, %v335
    %v347 = vmul.f32 %v324, %v335
    %v348 = vmul.f32 %v325, %v335
    %v349 = vmul.f32 %v326, %v335
    %v350 = vmul.f32 %v327, %v335
    %v351 = vmul.f32 %v328, %v335
    %v352 = vmul.f32 %v329, %v335
    %v353 = vld [vmem:[%s3] sm:$0x1]
    %v355 = vlaneseq
    %v356 = vshrl.u32 %v355, 7
    %v357 = vsub.s32 0, %v356
    %v358 = vrot.slane %v353, %v357
    %v360 = vadd.f32 %v337, %v358
    %v361 = vadd.f32 %v338, %v358
    %v362 = vadd.f32 %v339, %v358
    %v363 = vadd.f32 %v340, %v358
    %v364 = vadd.f32 %v341, %v358
    %v365 = vadd.f32 %v342, %v358
    %v366 = vadd.f32 %v343, %v358
    %v367 = vadd.f32 %v344, %v358
    %v368 = vadd.f32 %v345, %v358
    %v369 = vadd.f32 %v346, %v358
    %v370 = vadd.f32 %v347, %v358
    %v371 = vadd.f32 %v348, %v358
    %v372 = vadd.f32 %v349, %v358
    %v373 = vadd.f32 %v350, %v358
    %v374 = vadd.f32 %v351, %v358
    %v375 = vadd.f32 %v352, %v358
    %v376 = vmax.f32 %v360, 0.0
    %v377 = vmax.f32 %v361, 0.0
    %v378 = vmax.f32 %v362, 0.0
    %v379 = vmax.f32 %v363, 0.0
    %v380 = vmax.f32 %v364, 0.0
    %v381 = vmax.f32 %v365, 0.0
    %v382 = vmax.f32 %v366, 0.0
    %v383 = vmax.f32 %v367, 0.0
    %v384 = vmax.f32 %v368, 0.0
    %v385 = vmax.f32 %v369, 0.0
    %v386 = vmax.f32 %v370, 0.0
    %v387 = vmax.f32 %v371, 0.0
    %v388 = vmax.f32 %v372, 0.0
    %v389 = vmax.f32 %v373, 0.0
    %v390 = vmax.f32 %v374, 0.0
    %v391 = vmax.f32 %v375, 0.0
    %v392 = vpack.c.bf16 %v377, %v376
    %v393 = vpack.c.bf16 %v379, %v378
    %v394 = vpack.c.bf16 %v381, %v380
    %v395 = vpack.c.bf16 %v383, %v382
    %v396 = vpack.c.bf16 %v385, %v384
    %v397 = vpack.c.bf16 %v387, %v386
    %v398 = vpack.c.bf16 %v389, %v388
    %v399 = vpack.c.bf16 %v391, %v390
    %v408 = vunpack.c.l.b16 %v392
    %v409 = vunpack.c.h.b16 %v392
    %v410 = vunpack.c.l.b16 %v393
    %v411 = vunpack.c.h.b16 %v393
    %v412 = vunpack.c.l.b16 %v394
    %v413 = vunpack.c.h.b16 %v394
    %v414 = vunpack.c.l.b16 %v395
    %v415 = vunpack.c.h.b16 %v395
    %v416 = vunpack.c.l.b16 %v396
    %v417 = vunpack.c.h.b16 %v396
    %v418 = vunpack.c.l.b16 %v397
    %v419 = vunpack.c.h.b16 %v397
    %v420 = vunpack.c.l.b16 %v398
    %v421 = vunpack.c.h.b16 %v398
    %v422 = vunpack.c.l.b16 %v399
    %v423 = vunpack.c.h.b16 %v399
    %v424 = vpack.c.b16 %v408, %v408
    %v425 = vpack.c.b16 %v409, %v409
    %v426 = vpack.c.b16 %v410, %v410
    %v427 = vpack.c.b16 %v411, %v411
    %v428 = vpack.c.b16 %v412, %v412
    %v429 = vpack.c.b16 %v413, %v413
    %v430 = vpack.c.b16 %v414, %v414
    %v431 = vpack.c.b16 %v415, %v415
    %v432 = vpack.c.b16 %v416, %v416
    %v433 = vpack.c.b16 %v417, %v417
    %v434 = vpack.c.b16 %v418, %v418
    %v435 = vpack.c.b16 %v419, %v419
    %v436 = vpack.c.b16 %v420, %v420
    %v437 = vpack.c.b16 %v421, %v421
    %v438 = vpack.c.b16 %v422, %v422
    %v439 = vpack.c.b16 %v423, %v423
    %456 = vst [vmem:[%s4] sm:$0xf] %v424
    %457 = vst [vmem:[%s4 + $0x4] sm:$0xf] %v425
    %458 = vst [vmem:[%s4 + $0x8] sm:$0xf] %v426
    %459 = vst [vmem:[%s4 + $0xc] sm:$0xf] %v427
    %460 = vst [vmem:[%s4 + $0x10] sm:$0xf] %v428
    %461 = vst [vmem:[%s4 + $0x14] sm:$0xf] %v429
    %462 = vst [vmem:[%s4 + $0x18] sm:$0xf] %v430
    %463 = vst [vmem:[%s4 + $0x1c] sm:$0xf] %v431
    %464 = vst [vmem:[%s4 + $0x20] sm:$0xf] %v432
    %465 = vst [vmem:[%s4 + $0x24] sm:$0xf] %v433
    %466 = vst [vmem:[%s4 + $0x28] sm:$0xf] %v434
    %467 = vst [vmem:[%s4 + $0x2c] sm:$0xf] %v435
    %468 = vst [vmem:[%s4 + $0x30] sm:$0xf] %v436
    %469 = vst [vmem:[%s4 + $0x34] sm:$0xf] %v437
    %470 = vst [vmem:[%s4 + $0x38] sm:$0xf] %v438
    %471 = vst [vmem:[%s4 + $0x3c] sm:$0xf] %v439
  $region25: #{forward.7} parent=0 // pred_fallthru
    _
  // Predicated region
  $region26: #{forward.7} parent=0 // pred_check
    _
  $region27: #{forward.7} parent=0 // pred_check_branch
    %473 = sbr.rel (0) target = $region29
  $region28: #{forward.7} parent=0 // pred_region
    _
  $region29: #{forward.7} parent=0 // pred_fallthru
    _
  // Predicated region
  $region30: #{forward.7} parent=0 // pred_check
    _
  $region31: #{forward.7} parent=0 // pred_check_branch
    %475 = sbr.rel (0) target = $region33
  $region32: #{forward.7} parent=0 // pred_region
    _
  $region33: #{forward.7} parent=0 // pred_fallthru
    _

// kernel: forward.8
$region0: #{forward.8}
  #allocation0 [shape = 'u32[]', space=smem, size = 0x4, offset = 0x4, fixed_abs, tag = 'smem constant byte address 0x4 - core index']
  #allocation1 [shape = 'u32[144,128]{1,0:T(1,128)}', space=vmem, size = 0x12000, scoped, tag = 'internal scratch']
  #allocation2 [shape = 'f32[128,128]{1,0:T(8,128)}', space=vmem, size = 0x10000, scoped, tag = 'scratch operand']
  %s0 = inlined_call_operand.vmem [shape: bf16[128,256], index: 0, kind: input, shape index: {}]
  %s1 = inlined_call_operand.vmem [shape: bf16[256,128], index: 1, kind: input, shape index: {}]
  %s2 = inlined_call_operand.vmem [shape: f32[1,128], index: 2, kind: input, shape index: {}]
  %s3 = inlined_call_operand.vmem [shape: f32[1,128], index: 3, kind: input, shape index: {}]
  %s4 = inlined_call_operand.vmem [shape: bf16[128,128], index: 4, kind: output, shape index: {}]
  %s5 = sld [smem:[#allocation0]]
  $region34: #{forward.8} parent=0
    _
  %s7 = ssub.s32 1, %s5
  %s8 = scalar_select 0, %s7, %s5
  // Predicated region
  $region2: #{forward.8} parent=0 // pred_check
    _
  $region3: #{forward.8} parent=0 // pred_check_branch
    %10 = sbr.rel (0) target = $region5
  $region4: #{forward.8} parent=0 // pred_region
    _
  $region5: #{forward.8} parent=0 // pred_fallthru
    _
  // Predicated region
  $region6: #{forward.8} parent=0 // pred_check
    _
  $region7: #{forward.8} parent=0 // pred_check_branch
    %12 = sbr.rel (0) target = $region9
  $region8: #{forward.8} parent=0 // pred_region
    _
  $region9: #{forward.8} parent=0 // pred_fallthru
    _
  // Predicated region
  $region10: #{forward.8} parent=0 // pred_check
    _
  $region11: #{forward.8} parent=0 // pred_check_branch
    %14 = sbr.rel (0) target = $region13
  $region12: #{forward.8} parent=0 // pred_region
    _
  $region13: #{forward.8} parent=0 // pred_fallthru
    _
  // Predicated region
  $region14: #{forward.8} parent=0 // pred_check
    _
  $region15: #{forward.8} parent=0 // pred_check_branch
    %16 = sbr.rel (0) target = $region17
  $region16: #{forward.8} parent=0 // pred_region
    _
  $region17: #{forward.8} parent=0 // pred_fallthru
    _
  %p18 = scmp.eq.s32.totalorder 0, 0
  // Predicated region
  $region18: #{forward.8} parent=0 // pred_check
    %p19 = pneg %p18
  $region19: #{forward.8} parent=0 // pred_check_branch
    %21 = sbr.rel (%p19) target = $region21
  $region20: #{forward.8} parent=0 // pred_region
    %22 = vst [vmem:[#allocation2] sm:$0xff] 0.0
    %23 = vst [vmem:[#allocation2 + $0x8] sm:$0xff] 0.0
    %24 = vst [vmem:[#allocation2 + $0x10] sm:$0xff] 0.0
    %25 = vst [vmem:[#allocation2 + $0x18] sm:$0xff] 0.0
    %26 = vst [vmem:[#allocation2 + $0x20] sm:$0xff] 0.0
    %27 = vst [vmem:[#allocation2 + $0x28] sm:$0xff] 0.0
    %28 = vst [vmem:[#allocation2 + $0x30] sm:$0xff] 0.0
    %29 = vst [vmem:[#allocation2 + $0x38] sm:$0xff] 0.0
    %30 = vst [vmem:[#allocation2 + $0x40] sm:$0xff] 0.0
    %31 = vst [vmem:[#allocation2 + $0x48] sm:$0xff] 0.0
    %32 = vst [vmem:[#allocation2 + $0x50] sm:$0xff] 0.0
    %33 = vst [vmem:[#allocation2 + $0x58] sm:$0xff] 0.0
    %34 = vst [vmem:[#allocation2 + $0x60] sm:$0xff] 0.0
    %35 = vst [vmem:[#allocation2 + $0x68] sm:$0xff] 0.0
    %36 = vst [vmem:[#allocation2 + $0x70] sm:$0xff] 0.0
    %37 = vst [vmem:[#allocation2 + $0x78] sm:$0xff] 0.0
  $region21: #{forward.8} parent=0 // pred_fallthru
    _
  %v38 = vld [vmem:[#allocation2] sm:$0xff]
  %v39 = vld [vmem:[#allocation2 + $0x8] sm:$0xff]
  %v40 = vld [vmem:[#allocation2 + $0x10] sm:$0xff]
  %v41 = vld [vmem:[#allocation2 + $0x18] sm:$0xff]
  %v42 = vld [vmem:[#allocation2 + $0x20] sm:$0xff]
  %v43 = vld [vmem:[#allocation2 + $0x28] sm:$0xff]
  %v44 = vld [vmem:[#allocation2 + $0x30] sm:$0xff]
  %v45 = vld [vmem:[#allocation2 + $0x38] sm:$0xff]
  %v46 = vld [vmem:[#allocation2 + $0x40] sm:$0xff]
  %v47 = vld [vmem:[#allocation2 + $0x48] sm:$0xff]
  %v48 = vld [vmem:[#allocation2 + $0x50] sm:$0xff]
  %v49 = vld [vmem:[#allocation2 + $0x58] sm:$0xff]
  %v50 = vld [vmem:[#allocation2 + $0x60] sm:$0xff]
  %v51 = vld [vmem:[#allocation2 + $0x68] sm:$0xff]
  %v52 = vld [vmem:[#allocation2 + $0x70] sm:$0xff]
  %v53 = vld [vmem:[#allocation2 + $0x78] sm:$0xff]
  %v54 = vld [vmem:[%s0] sm:$0xff]
  %v55 = vld [vmem:[%s0 + $0x8] sm:$0xff]
  %v56 = vld [vmem:[%s0 + $0x10] sm:$0xff]
  %v57 = vld [vmem:[%s0 + $0x18] sm:$0xff]
  %v58 = vld [vmem:[%s0 + $0x20] sm:$0xff]
  %v59 = vld [vmem:[%s0 + $0x28] sm:$0xff]
  %v60 = vld [vmem:[%s0 + $0x30] sm:$0xff]
  %v61 = vld [vmem:[%s0 + $0x38] sm:$0xff]
  %v62 = vld [vmem:[%s0 + $0x40] sm:$0xff]
  %v63 = vld [vmem:[%s0 + $0x48] sm:$0xff]
  %v64 = vld [vmem:[%s0 + $0x50] sm:$0xff]
  %v65 = vld [vmem:[%s0 + $0x58] sm:$0xff]
  %v66 = vld [vmem:[%s0 + $0x60] sm:$0xff]
  %v67 = vld [vmem:[%s0 + $0x68] sm:$0xff]
  %v68 = vld [vmem:[%s0 + $0x70] sm:$0xff]
  %v69 = vld [vmem:[%s0 + $0x78] sm:$0xff]
  %v70 = vld [vmem:[%s1] sm:$0xf]
  %v71 = vld [vmem:[%s1 + $0x4] sm:$0xf]
  %v72 = vld [vmem:[%s1 + $0x8] sm:$0xf]
  %v73 = vld [vmem:[%s1 + $0xc] sm:$0xf]
  %v74 = vld [vmem:[%s1 + $0x10] sm:$0xf]
  %v75 = vld [vmem:[%s1 + $0x14] sm:$0xf]
  %v76 = vld [vmem:[%s1 + $0x18] sm:$0xf]
  %v77 = vld [vmem:[%s1 + $0x1c] sm:$0xf]
  %v78 = vld [vmem:[%s1 + $0x20] sm:$0xf]
  %v79 = vld [vmem:[%s1 + $0x24] sm:$0xf]
  %v80 = vld [vmem:[%s1 + $0x28] sm:$0xf]
  %v81 = vld [vmem:[%s1 + $0x2c] sm:$0xf]
  %v82 = vld [vmem:[%s1 + $0x30] sm:$0xf]
  %v83 = vld [vmem:[%s1 + $0x34] sm:$0xf]
  %v84 = vld [vmem:[%s1 + $0x38] sm:$0xf]
  %v85 = vld [vmem:[%s1 + $0x3c] sm:$0xf]
  %v86 = vld [vmem:[%s1 + $0x40] sm:$0xf]
  %v87 = vld [vmem:[%s1 + $0x44] sm:$0xf]
  %v88 = vld [vmem:[%s1 + $0x48] sm:$0xf]
  %v89 = vld [vmem:[%s1 + $0x4c] sm:$0xf]
  %v90 = vld [vmem:[%s1 + $0x50] sm:$0xf]
  %v91 = vld [vmem:[%s1 + $0x54] sm:$0xf]
  %v92 = vld [vmem:[%s1 + $0x58] sm:$0xf]
  %v93 = vld [vmem:[%s1 + $0x5c] sm:$0xf]
  %v94 = vld [vmem:[%s1 + $0x60] sm:$0xf]
  %v95 = vld [vmem:[%s1 + $0x64] sm:$0xf]
  %v96 = vld [vmem:[%s1 + $0x68] sm:$0xf]
  %v97 = vld [vmem:[%s1 + $0x6c] sm:$0xf]
  %v98 = vld [vmem:[%s1 + $0x70] sm:$0xf]
  %v99 = vld [vmem:[%s1 + $0x74] sm:$0xf]
  %v100 = vld [vmem:[%s1 + $0x78] sm:$0xf]
  %v101 = vld [vmem:[%s1 + $0x7c] sm:$0xf]
  %v118 = vunpack.c.l.b16 %v54
  %v119 = vunpack.c.h.b16 %v54
  %v120 = vunpack.c.l.b16 %v55
  %v121 = vunpack.c.h.b16 %v55
  %v122 = vunpack.c.l.b16 %v56
  %v123 = vunpack.c.h.b16 %v56
  %v124 = vunpack.c.l.b16 %v57
  %v125 = vunpack.c.h.b16 %v57
  %v126 = vunpack.c.l.b16 %v58
  %v127 = vunpack.c.h.b16 %v58
  %v128 = vunpack.c.l.b16 %v59
  %v129 = vunpack.c.h.b16 %v59
  %v130 = vunpack.c.l.b16 %v60
  %v131 = vunpack.c.h.b16 %v60
  %v132 = vunpack.c.l.b16 %v61
  %v133 = vunpack.c.h.b16 %v61
  %v134 = vunpack.c.l.b16 %v62
  %v135 = vunpack.c.h.b16 %v62
  %v136 = vunpack.c.l.b16 %v63
  %v137 = vunpack.c.h.b16 %v63
  %v138 = vunpack.c.l.b16 %v64
  %v139 = vunpack.c.h.b16 %v64
  %v140 = vunpack.c.l.b16 %v65
  %v141 = vunpack.c.h.b16 %v65
  %v142 = vunpack.c.l.b16 %v66
  %v143 = vunpack.c.h.b16 %v66
  %v144 = vunpack.c.l.b16 %v67
  %v145 = vunpack.c.h.b16 %v67
  %v146 = vunpack.c.l.b16 %v68
  %v147 = vunpack.c.h.b16 %v68
  %v148 = vunpack.c.l.b16 %v69
  %v149 = vunpack.c.h.b16 %v69
  %v150 = vpack.c.b16 %v120, %v118
  %v151 = vpack.c.b16 %v121, %v119
  %v152 = vpack.c.b16 %v124, %v122
  %v153 = vpack.c.b16 %v125, %v123
  %v154 = vpack.c.b16 %v128, %v126
  %v155 = vpack.c.b16 %v129, %v127
  %v156 = vpack.c.b16 %v132, %v130
  %v157 = vpack.c.b16 %v133, %v131
  %v158 = vpack.c.b16 %v136, %v134
  %v159 = vpack.c.b16 %v137, %v135
  %v160 = vpack.c.b16 %v140, %v138
  %v161 = vpack.c.b16 %v141, %v139
  %v162 = vpack.c.b16 %v144, %v142
  %v163 = vpack.c.b16 %v145, %v143
  %v164 = vpack.c.b16 %v148, %v146
  %v165 = vpack.c.b16 %v149, %v147
  %v214 = vunpack.c.l.b16 %v70
  %v215 = vunpack.c.l.b16 %v71
  %v216 = vunpack.c.l.b16 %v72
  %v217 = vunpack.c.l.b16 %v73
  %v218 = vunpack.c.l.b16 %v74
  %v219 = vunpack.c.l.b16 %v75
  %v220 = vunpack.c.l.b16 %v76
  %v221 = vunpack.c.l.b16 %v77
  %v222 = vunpack.c.l.b16 %v78
  %v223 = vunpack.c.l.b16 %v79
  %v224 = vunpack.c.l.b16 %v80
  %v225 = vunpack.c.l.b16 %v81
  %v226 = vunpack.c.l.b16 %v82
  %v227 = vunpack.c.l.b16 %v83
  %v228 = vunpack.c.l.b16 %v84
  %v229 = vunpack.c.l.b16 %v85
  %v230 = vunpack.c.l.b16 %v86
  %v231 = vunpack.c.l.b16 %v87
  %v232 = vunpack.c.l.b16 %v88
  %v233 = vunpack.c.l.b16 %v89
  %v234 = vunpack.c.l.b16 %v90
  %v235 = vunpack.c.l.b16 %v91
  %v236 = vunpack.c.l.b16 %v92
  %v237 = vunpack.c.l.b16 %v93
  %v238 = vunpack.c.l.b16 %v94
  %v239 = vunpack.c.l.b16 %v95
  %v240 = vunpack.c.l.b16 %v96
  %v241 = vunpack.c.l.b16 %v97
  %v242 = vunpack.c.l.b16 %v98
  %v243 = vunpack.c.l.b16 %v99
  %v244 = vunpack.c.l.b16 %v100
  %v245 = vunpack.c.l.b16 %v101
  %v246 = vpack.c.b16 %v215, %v214
  %v247 = vpack.c.b16 %v217, %v216
  %v248 = vpack.c.b16 %v219, %v218
  %v249 = vpack.c.b16 %v221, %v220
  %v250 = vpack.c.b16 %v223, %v222
  %v251 = vpack.c.b16 %v225, %v224
  %v252 = vpack.c.b16 %v227, %v226
  %v253 = vpack.c.b16 %v229, %v228
  %v254 = vpack.c.b16 %v231, %v230
  %v255 = vpack.c.b16 %v233, %v232
  %v256 = vpack.c.b16 %v235, %v234
  %v257 = vpack.c.b16 %v237, %v236
  %v258 = vpack.c.b16 %v239, %v238
  %v259 = vpack.c.b16 %v241, %v240
  %v260 = vpack.c.b16 %v243, %v242
  %v261 = vpack.c.b16 %v245, %v244
  %278 = vmatprep.subr.bf16.mxu0 0
  %279 = vmatpush1.bf16.msra.mxu0 %v253
  %280 = vmatprep.subr.bf16.mxu0 0
  %281 = vmatpush1.bf16.msra.mxu0 %v252
  %282 = vmatprep.subr.bf16.mxu0 0
  %283 = vmatpush1.bf16.msra.mxu0 %v251
  %284 = vmatprep.subr.bf16.mxu0 0
  %285 = vmatpush1.bf16.msra.mxu0 %v250
  %286 = vmatprep.subr.bf16.mxu0 0
  %287 = vmatpush1.bf16.msra.mxu0 %v249
  %288 = vmatprep.subr.bf16.mxu0 0
  %289 = vmatpush1.bf16.msra.mxu0 %v248
  %290 = vmatprep.subr.bf16.mxu0 0
  %291 = vmatpush1.bf16.msra.mxu0 %v247
  %292 = vmatprep.subr.bf16.mxu0 0
  %293 = vmatpush1.bf16.msra.mxu0 %v246
  %294 = vmatprep.subr.bf16.mxu0 0
  %295 = vmatpush2.bf16.msra.mxu0 %v261
  %296 = vmatprep.subr.bf16.mxu0 0
  %297 = vmatpush2.bf16.msra.mxu0 %v260
  %298 = vmatprep.subr.bf16.mxu0 0
  %299 = vmatpush2.bf16.msra.mxu0 %v259
  %300 = vmatprep.subr.bf16.mxu0 0
  %301 = vmatpush2.bf16.msra.mxu0 %v258
  %302 = vmatprep.subr.bf16.mxu0 0
  %303 = vmatpush2.bf16.msra.mxu0 %v257
  %304 = vmatprep.subr.bf16.mxu0 0
  %305 = vmatpush2.bf16.msra.mxu0 %v256
  %306 = vmatprep.subr.bf16.mxu0 0
  %307 = vmatpush2.bf16.msra.mxu0 %v255
  %308 = vmatprep.subr.bf16.mxu0 0
  %309 = vmatpush2.bf16.msra.mxu0 %v254
  %310 = vmatprep.mubr.bf16.mxu0 %v151
  %311 = vmatmul.mubr.bf16.gmra.mxu0 %v150
  %v312 = vpop.f32.mrf.mxu0
  %v313 = vadd.f32 0.0, %v312
  %v314 = vpop.f32.mrf.mxu0
  %v315 = vpop.f32.mrf.mxu0
  %v316 = vadd.f32 0.0, %v315
  %v317 = vpop.f32.mrf.mxu0
  %318 = vmatprep.mubr.bf16.mxu0 %v153
  %319 = vmatmul.mubr.bf16.gmra.mxu0 %v152
  %v320 = vpop.f32.mrf.mxu0
  %v321 = vadd.f32 0.0, %v320
  %v322 = vpop.f32.mrf.mxu0
  %v323 = vpop.f32.mrf.mxu0
  %v324 = vadd.f32 0.0, %v323
  %v325 = vpop.f32.mrf.mxu0
  %326 = vmatprep.mubr.bf16.mxu0 %v155
  %327 = vmatmul.mubr.bf16.gmra.mxu0 %v154
  %v328 = vpop.f32.mrf.mxu0
  %v329 = vadd.f32 0.0, %v328
  %v330 = vpop.f32.mrf.mxu0
  %v331 = vpop.f32.mrf.mxu0
  %v332 = vadd.f32 0.0, %v331
  %v333 = vpop.f32.mrf.mxu0
  %334 = vmatprep.mubr.bf16.mxu0 %v157
  %335 = vmatmul.mubr.bf16.gmra.mxu0 %v156
  %v336 = vpop.f32.mrf.mxu0
  %v337 = vadd.f32 0.0, %v336
  %v338 = vpop.f32.mrf.mxu0
  %v339 = vpop.f32.mrf.mxu0
  %v340 = vadd.f32 0.0, %v339
  %v341 = vpop.f32.mrf.mxu0
  %342 = vmatprep.mubr.bf16.mxu0 %v159
  %343 = vmatmul.mubr.bf16.gmra.mxu0 %v158
  %v344 = vpop.f32.mrf.mxu0
  %v345 = vadd.f32 0.0, %v344
  %v346 = vpop.f32.mrf.mxu0
  %v347 = vpop.f32.mrf.mxu0
  %v348 = vadd.f32 0.0, %v347
  %v349 = vpop.f32.mrf.mxu0
  %350 = vmatprep.mubr.bf16.mxu0 %v161
  %351 = vmatmul.mubr.bf16.gmra.mxu0 %v160
  %v352 = vpop.f32.mrf.mxu0
  %v353 = vadd.f32 0.0, %v352
  %v354 = vpop.f32.mrf.mxu0
  %v355 = vpop.f32.mrf.mxu0
  %v356 = vadd.f32 0.0, %v355
  %v357 = vpop.f32.mrf.mxu0
  %358 = vmatprep.mubr.bf16.mxu0 %v163
  %359 = vmatmul.mubr.bf16.gmra.mxu0 %v162
  %v360 = vpop.f32.mrf.mxu0
  %v361 = vadd.f32 0.0, %v360
  %v362 = vpop.f32.mrf.mxu0
  %v363 = vpop.f32.mrf.mxu0
  %v364 = vadd.f32 0.0, %v363
  %v365 = vpop.f32.mrf.mxu0
  %366 = vmatprep.mubr.bf16.mxu0 %v165
  %367 = vmatmul.mubr.bf16.gmra.mxu0 %v164
  %v368 = vpop.f32.mrf.mxu0
  %v369 = vadd.f32 0.0, %v368
  %v370 = vpop.f32.mrf.mxu0
  %v371 = vpop.f32.mrf.mxu0
  %v372 = vadd.f32 0.0, %v371
  %v373 = vpop.f32.mrf.mxu0
  %374 = vdwg.mxu0
  %v375 = vadd.f32 %v38, %v313
  %v376 = vadd.f32 %v39, %v316
  %v377 = vadd.f32 %v40, %v321
  %v378 = vadd.f32 %v41, %v324
  %v379 = vadd.f32 %v42, %v329
  %v380 = vadd.f32 %v43, %v332
  %v381 = vadd.f32 %v44, %v337
  %v382 = vadd.f32 %v45, %v340
  %v383 = vadd.f32 %v46, %v345
  %v384 = vadd.f32 %v47, %v348
  %v385 = vadd.f32 %v48, %v353
  %v386 = vadd.f32 %v49, %v356
  %v387 = vadd.f32 %v50, %v361
  %v388 = vadd.f32 %v51, %v364
  %v389 = vadd.f32 %v52, %v369
  %v390 = vadd.f32 %v53, %v372
  %391 = vst [vmem:[#allocation2] sm:$0xff] %v375
  %392 = vst [vmem:[#allocation2 + $0x8] sm:$0xff] %v376
  %393 = vst [vmem:[#allocation2 + $0x10] sm:$0xff] %v377
  %394 = vst [vmem:[#allocation2 + $0x18] sm:$0xff] %v378
  %395 = vst [vmem:[#allocation2 + $0x20] sm:$0xff] %v379
  %396 = vst [vmem:[#allocation2 + $0x28] sm:$0xff] %v380
  %397 = vst [vmem:[#allocation2 + $0x30] sm:$0xff] %v381
  %398 = vst [vmem:[#allocation2 + $0x38] sm:$0xff] %v382
  %399 = vst [vmem:[#allocation2 + $0x40] sm:$0xff] %v383
  %400 = vst [vmem:[#allocation2 + $0x48] sm:$0xff] %v384
  %401 = vst [vmem:[#allocation2 + $0x50] sm:$0xff] %v385
  %402 = vst [vmem:[#allocation2 + $0x58] sm:$0xff] %v386
  %403 = vst [vmem:[#allocation2 + $0x60] sm:$0xff] %v387
  %404 = vst [vmem:[#allocation2 + $0x68] sm:$0xff] %v388
  %405 = vst [vmem:[#allocation2 + $0x70] sm:$0xff] %v389
  %406 = vst [vmem:[#allocation2 + $0x78] sm:$0xff] %v390
  // Predicated region
  $region22: #{forward.8} parent=0 // pred_check
    %p407 = pneg %p18
  $region23: #{forward.8} parent=0 // pred_check_branch
    %409 = sbr.rel (%p407) target = $region25
  $region24: #{forward.8} parent=0 // pred_region
    %v410 = vld [vmem:[#allocation2] sm:$0xff]
    %v411 = vld [vmem:[#allocation2 + $0x8] sm:$0xff]
    %v412 = vld [vmem:[#allocation2 + $0x10] sm:$0xff]
    %v413 = vld [vmem:[#allocation2 + $0x18] sm:$0xff]
    %v414 = vld [vmem:[#allocation2 + $0x20] sm:$0xff]
    %v415 = vld [vmem:[#allocation2 + $0x28] sm:$0xff]
    %v416 = vld [vmem:[#allocation2 + $0x30] sm:$0xff]
    %v417 = vld [vmem:[#allocation2 + $0x38] sm:$0xff]
    %v418 = vld [vmem:[#allocation2 + $0x40] sm:$0xff]
    %v419 = vld [vmem:[#allocation2 + $0x48] sm:$0xff]
    %v420 = vld [vmem:[#allocation2 + $0x50] sm:$0xff]
    %v421 = vld [vmem:[#allocation2 + $0x58] sm:$0xff]
    %v422 = vld [vmem:[#allocation2 + $0x60] sm:$0xff]
    %v423 = vld [vmem:[#allocation2 + $0x68] sm:$0xff]
    %v424 = vld [vmem:[#allocation2 + $0x70] sm:$0xff]
    %v425 = vld [vmem:[#allocation2 + $0x78] sm:$0xff]
    %v426 = vld [vmem:[%s2] sm:$0x1]
    %v428 = vlaneseq
    %v429 = vshrl.u32 %v428, 7
    %v430 = vsub.s32 0, %v429
    %v431 = vrot.slane %v426, %v430
    %v433 = vmul.f32 %v410, %v431
    %v434 = vmul.f32 %v411, %v431
    %v435 = vmul.f32 %v412, %v431
    %v436 = vmul.f32 %v413, %v431
    %v437 = vmul.f32 %v414, %v431
    %v438 = vmul.f32 %v415, %v431
    %v439 = vmul.f32 %v416, %v431
    %v440 = vmul.f32 %v417, %v431
    %v441 = vmul.f32 %v418, %v431
    %v442 = vmul.f32 %v419, %v431
    %v443 = vmul.f32 %v420, %v431
    %v444 = vmul.f32 %v421, %v431
    %v445 = vmul.f32 %v422, %v431
    %v446 = vmul.f32 %v423, %v431
    %v447 = vmul.f32 %v424, %v431
    %v448 = vmul.f32 %v425, %v431
    %v449 = vld [vmem:[%s3] sm:$0x1]
    %v451 = vlaneseq
    %v452 = vshrl.u32 %v451, 7
    %v453 = vsub.s32 0, %v452
    %v454 = vrot.slane %v449, %v453
    %v456 = vadd.f32 %v433, %v454
    %v457 = vadd.f32 %v434, %v454
    %v458 = vadd.f32 %v435, %v454
    %v459 = vadd.f32 %v436, %v454
    %v460 = vadd.f32 %v437, %v454
    %v461 = vadd.f32 %v438, %v454
    %v462 = vadd.f32 %v439, %v454
    %v463 = vadd.f32 %v440, %v454
    %v464 = vadd.f32 %v441, %v454
    %v465 = vadd.f32 %v442, %v454
    %v466 = vadd.f32 %v443, %v454
    %v467 = vadd.f32 %v444, %v454
    %v468 = vadd.f32 %v445, %v454
    %v469 = vadd.f32 %v446, %v454
    %v470 = vadd.f32 %v447, %v454
    %v471 = vadd.f32 %v448, %v454
    %v472 = vmax.f32 %v456, 0.0
    %v473 = vmax.f32 %v457, 0.0
    %v474 = vmax.f32 %v458, 0.0
    %v475 = vmax.f32 %v459, 0.0
    %v476 = vmax.f32 %v460, 0.0
    %v477 = vmax.f32 %v461, 0.0
    %v478 = vmax.f32 %v462, 0.0
    %v479 = vmax.f32 %v463, 0.0
    %v480 = vmax.f32 %v464, 0.0
    %v481 = vmax.f32 %v465, 0.0
    %v482 = vmax.f32 %v466, 0.0
    %v483 = vmax.f32 %v467, 0.0
    %v484 = vmax.f32 %v468, 0.0
    %v485 = vmax.f32 %v469, 0.0
    %v486 = vmax.f32 %v470, 0.0
    %v487 = vmax.f32 %v471, 0.0
    %v488 = vpack.c.bf16 %v473, %v472
    %v489 = vpack.c.bf16 %v475, %v474
    %v490 = vpack.c.bf16 %v477, %v476
    %v491 = vpack.c.bf16 %v479, %v478
    %v492 = vpack.c.bf16 %v481, %v480
    %v493 = vpack.c.bf16 %v483, %v482
    %v494 = vpack.c.bf16 %v485, %v484
    %v495 = vpack.c.bf16 %v487, %v486
    %v504 = vunpack.c.l.b16 %v488
    %v505 = vunpack.c.h.b16 %v488
    %v506 = vunpack.c.l.b16 %v489
    %v507 = vunpack.c.h.b16 %v489
    %v508 = vunpack.c.l.b16 %v490
    %v509 = vunpack.c.h.b16 %v490
    %v510 = vunpack.c.l.b16 %v491
    %v511 = vunpack.c.h.b16 %v491
    %v512 = vunpack.c.l.b16 %v492
    %v513 = vunpack.c.h.b16 %v492
    %v514 = vunpack.c.l.b16 %v493
    %v515 = vunpack.c.h.b16 %v493
    %v516 = vunpack.c.l.b16 %v494
    %v517 = vunpack.c.h.b16 %v494
    %v518 = vunpack.c.l.b16 %v495
    %v519 = vunpack.c.h.b16 %v495
    %v520 = vpack.c.b16 %v504, %v504
    %v521 = vpack.c.b16 %v505, %v505
    %v522 = vpack.c.b16 %v506, %v506
    %v523 = vpack.c.b16 %v507, %v507
    %v524 = vpack.c.b16 %v508, %v508
    %v525 = vpack.c.b16 %v509, %v509
    %v526 = vpack.c.b16 %v510, %v510
    %v527 = vpack.c.b16 %v511, %v511
    %v528 = vpack.c.b16 %v512, %v512
    %v529 = vpack.c.b16 %v513, %v513
    %v530 = vpack.c.b16 %v514, %v514
    %v531 = vpack.c.b16 %v515, %v515
    %v532 = vpack.c.b16 %v516, %v516
    %v533 = vpack.c.b16 %v517, %v517
    %v534 = vpack.c.b16 %v518, %v518
    %v535 = vpack.c.b16 %v519, %v519
    %552 = vst [vmem:[%s4] sm:$0xf] %v520
    %553 = vst [vmem:[%s4 + $0x4] sm:$0xf] %v521
    %554 = vst [vmem:[%s4 + $0x8] sm:$0xf] %v522
    %555 = vst [vmem:[%s4 + $0xc] sm:$0xf] %v523
    %556 = vst [vmem:[%s4 + $0x10] sm:$0xf] %v524
    %557 = vst [vmem:[%s4 + $0x14] sm:$0xf] %v525
    %558 = vst [vmem:[%s4 + $0x18] sm:$0xf] %v526
    %559 = vst [vmem:[%s4 + $0x1c] sm:$0xf] %v527
    %560 = vst [vmem:[%s4 + $0x20] sm:$0xf] %v528
    %561 = vst [vmem:[%s4 + $0x24] sm:$0xf] %v529
    %562 = vst [vmem:[%s4 + $0x28] sm:$0xf] %v530
    %563 = vst [vmem:[%s4 + $0x2c] sm:$0xf] %v531
    %564 = vst [vmem:[%s4 + $0x30] sm:$0xf] %v532
    %565 = vst [vmem:[%s4 + $0x34] sm:$0xf] %v533
    %566 = vst [vmem:[%s4 + $0x38] sm:$0xf] %v534
    %567 = vst [vmem:[%s4 + $0x3c] sm:$0xf] %v535
  $region25: #{forward.8} parent=0 // pred_fallthru
    _
  // Predicated region
  $region26: #{forward.8} parent=0 // pred_check
    _
  $region27: #{forward.8} parent=0 // pred_check_branch
    %569 = sbr.rel (0) target = $region29
  $region28: #{forward.8} parent=0 // pred_region
    _
  $region29: #{forward.8} parent=0 // pred_fallthru
    _
  // Predicated region
  $region30: #{forward.8} parent=0 // pred_check
    _
  $region31: #{forward.8} parent=0 // pred_check_branch
    %571 = sbr.rel (0) target = $region33
  $region32: #{forward.8} parent=0 // pred_region
    _
  $region33: #{forward.8} parent=0 // pred_fallthru
    _

// kernel: forward.9
$region0: #{forward.9}
  #allocation0 [shape = 'u32[]', space=smem, size = 0x4, offset = 0x4, fixed_abs, tag = 'smem constant byte address 0x4 - core index']
  #allocation1 [shape = 'u32[144,128]{1,0:T(1,128)}', space=vmem, size = 0x12000, scoped, tag = 'internal scratch']
  #allocation2 [shape = 'f32[128,128]{1,0:T(8,128)}', space=vmem, size = 0x10000, scoped, tag = 'scratch operand']
  %s0 = inlined_call_operand.vmem [shape: bf16[128,128], index: 0, kind: input, shape index: {}]
  %s1 = inlined_call_operand.vmem [shape: bf16[128,128], index: 1, kind: input, shape index: {}]
  %s2 = inlined_call_operand.vmem [shape: f32[1,128], index: 2, kind: input, shape index: {}]
  %s3 = inlined_call_operand.vmem [shape: f32[1,128], index: 3, kind: input, shape index: {}]
  %s4 = inlined_call_operand.vmem [shape: bf16[128,128], index: 4, kind: output, shape index: {}]
  %s5 = sld [smem:[#allocation0]]
  $region34: #{forward.9} parent=0
    _
  %s7 = ssub.s32 1, %s5
  %s8 = scalar_select 0, %s7, %s5
  // Predicated region
  $region2: #{forward.9} parent=0 // pred_check
    _
  $region3: #{forward.9} parent=0 // pred_check_branch
    %10 = sbr.rel (0) target = $region5
  $region4: #{forward.9} parent=0 // pred_region
    _
  $region5: #{forward.9} parent=0 // pred_fallthru
    _
  // Predicated region
  $region6: #{forward.9} parent=0 // pred_check
    _
  $region7: #{forward.9} parent=0 // pred_check_branch
    %12 = sbr.rel (0) target = $region9
  $region8: #{forward.9} parent=0 // pred_region
    _
  $region9: #{forward.9} parent=0 // pred_fallthru
    _
  // Predicated region
  $region10: #{forward.9} parent=0 // pred_check
    _
  $region11: #{forward.9} parent=0 // pred_check_branch
    %14 = sbr.rel (0) target = $region13
  $region12: #{forward.9} parent=0 // pred_region
    _
  $region13: #{forward.9} parent=0 // pred_fallthru
    _
  // Predicated region
  $region14: #{forward.9} parent=0 // pred_check
    _
  $region15: #{forward.9} parent=0 // pred_check_branch
    %16 = sbr.rel (0) target = $region17
  $region16: #{forward.9} parent=0 // pred_region
    _
  $region17: #{forward.9} parent=0 // pred_fallthru
    _
  %p18 = scmp.eq.s32.totalorder 0, 0
  // Predicated region
  $region18: #{forward.9} parent=0 // pred_check
    %p19 = pneg %p18
  $region19: #{forward.9} parent=0 // pred_check_branch
    %21 = sbr.rel (%p19) target = $region21
  $region20: #{forward.9} parent=0 // pred_region
    %22 = vst [vmem:[#allocation2] sm:$0xff] 0.0
    %23 = vst [vmem:[#allocation2 + $0x8] sm:$0xff] 0.0
    %24 = vst [vmem:[#allocation2 + $0x10] sm:$0xff] 0.0
    %25 = vst [vmem:[#allocation2 + $0x18] sm:$0xff] 0.0
    %26 = vst [vmem:[#allocation2 + $0x20] sm:$0xff] 0.0
    %27 = vst [vmem:[#allocation2 + $0x28] sm:$0xff] 0.0
    %28 = vst [vmem:[#allocation2 + $0x30] sm:$0xff] 0.0
    %29 = vst [vmem:[#allocation2 + $0x38] sm:$0xff] 0.0
    %30 = vst [vmem:[#allocation2 + $0x40] sm:$0xff] 0.0
    %31 = vst [vmem:[#allocation2 + $0x48] sm:$0xff] 0.0
    %32 = vst [vmem:[#allocation2 + $0x50] sm:$0xff] 0.0
    %33 = vst [vmem:[#allocation2 + $0x58] sm:$0xff] 0.0
    %34 = vst [vmem:[#allocation2 + $0x60] sm:$0xff] 0.0
    %35 = vst [vmem:[#allocation2 + $0x68] sm:$0xff] 0.0
    %36 = vst [vmem:[#allocation2 + $0x70] sm:$0xff] 0.0
    %37 = vst [vmem:[#allocation2 + $0x78] sm:$0xff] 0.0
  $region21: #{forward.9} parent=0 // pred_fallthru
    _
  %v38 = vld [vmem:[#allocation2] sm:$0xff]
  %v39 = vld [vmem:[#allocation2 + $0x8] sm:$0xff]
  %v40 = vld [vmem:[#allocation2 + $0x10] sm:$0xff]
  %v41 = vld [vmem:[#allocation2 + $0x18] sm:$0xff]
  %v42 = vld [vmem:[#allocation2 + $0x20] sm:$0xff]
  %v43 = vld [vmem:[#allocation2 + $0x28] sm:$0xff]
  %v44 = vld [vmem:[#allocation2 + $0x30] sm:$0xff]
  %v45 = vld [vmem:[#allocation2 + $0x38] sm:$0xff]
  %v46 = vld [vmem:[#allocation2 + $0x40] sm:$0xff]
  %v47 = vld [vmem:[#allocation2 + $0x48] sm:$0xff]
  %v48 = vld [vmem:[#allocation2 + $0x50] sm:$0xff]
  %v49 = vld [vmem:[#allocation2 + $0x58] sm:$0xff]
  %v50 = vld [vmem:[#allocation2 + $0x60] sm:$0xff]
  %v51 = vld [vmem:[#allocation2 + $0x68] sm:$0xff]
  %v52 = vld [vmem:[#allocation2 + $0x70] sm:$0xff]
  %v53 = vld [vmem:[#allocation2 + $0x78] sm:$0xff]
  %v54 = vld [vmem:[%s0] sm:$0xf]
  %v55 = vld [vmem:[%s0 + $0x4] sm:$0xf]
  %v56 = vld [vmem:[%s0 + $0x8] sm:$0xf]
  %v57 = vld [vmem:[%s0 + $0xc] sm:$0xf]
  %v58 = vld [vmem:[%s0 + $0x10] sm:$0xf]
  %v59 = vld [vmem:[%s0 + $0x14] sm:$0xf]
  %v60 = vld [vmem:[%s0 + $0x18] sm:$0xf]
  %v61 = vld [vmem:[%s0 + $0x1c] sm:$0xf]
  %v62 = vld [vmem:[%s0 + $0x20] sm:$0xf]
  %v63 = vld [vmem:[%s0 + $0x24] sm:$0xf]
  %v64 = vld [vmem:[%s0 + $0x28] sm:$0xf]
  %v65 = vld [vmem:[%s0 + $0x2c] sm:$0xf]
  %v66 = vld [vmem:[%s0 + $0x30] sm:$0xf]
  %v67 = vld [vmem:[%s0 + $0x34] sm:$0xf]
  %v68 = vld [vmem:[%s0 + $0x38] sm:$0xf]
  %v69 = vld [vmem:[%s0 + $0x3c] sm:$0xf]
  %v70 = vld [vmem:[%s1] sm:$0xf]
  %v71 = vld [vmem:[%s1 + $0x4] sm:$0xf]
  %v72 = vld [vmem:[%s1 + $0x8] sm:$0xf]
  %v73 = vld [vmem:[%s1 + $0xc] sm:$0xf]
  %v74 = vld [vmem:[%s1 + $0x10] sm:$0xf]
  %v75 = vld [vmem:[%s1 + $0x14] sm:$0xf]
  %v76 = vld [vmem:[%s1 + $0x18] sm:$0xf]
  %v77 = vld [vmem:[%s1 + $0x1c] sm:$0xf]
  %v78 = vld [vmem:[%s1 + $0x20] sm:$0xf]
  %v79 = vld [vmem:[%s1 + $0x24] sm:$0xf]
  %v80 = vld [vmem:[%s1 + $0x28] sm:$0xf]
  %v81 = vld [vmem:[%s1 + $0x2c] sm:$0xf]
  %v82 = vld [vmem:[%s1 + $0x30] sm:$0xf]
  %v83 = vld [vmem:[%s1 + $0x34] sm:$0xf]
  %v84 = vld [vmem:[%s1 + $0x38] sm:$0xf]
  %v85 = vld [vmem:[%s1 + $0x3c] sm:$0xf]
  %v102 = vunpack.c.l.b16 %v54
  %v103 = vunpack.c.l.b16 %v55
  %v104 = vunpack.c.l.b16 %v56
  %v105 = vunpack.c.l.b16 %v57
  %v106 = vunpack.c.l.b16 %v58
  %v107 = vunpack.c.l.b16 %v59
  %v108 = vunpack.c.l.b16 %v60
  %v109 = vunpack.c.l.b16 %v61
  %v110 = vunpack.c.l.b16 %v62
  %v111 = vunpack.c.l.b16 %v63
  %v112 = vunpack.c.l.b16 %v64
  %v113 = vunpack.c.l.b16 %v65
  %v114 = vunpack.c.l.b16 %v66
  %v115 = vunpack.c.l.b16 %v67
  %v116 = vunpack.c.l.b16 %v68
  %v117 = vunpack.c.l.b16 %v69
  %v118 = vpack.c.b16 %v103, %v102
  %v119 = vpack.c.b16 %v105, %v104
  %v120 = vpack.c.b16 %v107, %v106
  %v121 = vpack.c.b16 %v109, %v108
  %v122 = vpack.c.b16 %v111, %v110
  %v123 = vpack.c.b16 %v113, %v112
  %v124 = vpack.c.b16 %v115, %v114
  %v125 = vpack.c.b16 %v117, %v116
  %v150 = vunpack.c.l.b16 %v70
  %v151 = vunpack.c.l.b16 %v71
  %v152 = vunpack.c.l.b16 %v72
  %v153 = vunpack.c.l.b16 %v73
  %v154 = vunpack.c.l.b16 %v74
  %v155 = vunpack.c.l.b16 %v75
  %v156 = vunpack.c.l.b16 %v76
  %v157 = vunpack.c.l.b16 %v77
  %v158 = vunpack.c.l.b16 %v78
  %v159 = vunpack.c.l.b16 %v79
  %v160 = vunpack.c.l.b16 %v80
  %v161 = vunpack.c.l.b16 %v81
  %v162 = vunpack.c.l.b16 %v82
  %v163 = vunpack.c.l.b16 %v83
  %v164 = vunpack.c.l.b16 %v84
  %v165 = vunpack.c.l.b16 %v85
  %v166 = vpack.c.b16 %v151, %v150
  %v167 = vpack.c.b16 %v153, %v152
  %v168 = vpack.c.b16 %v155, %v154
  %v169 = vpack.c.b16 %v157, %v156
  %v170 = vpack.c.b16 %v159, %v158
  %v171 = vpack.c.b16 %v161, %v160
  %v172 = vpack.c.b16 %v163, %v162
  %v173 = vpack.c.b16 %v165, %v164
  %182 = vmatprep.subr.bf16.mxu0 0
  %183 = vmatpush1.bf16.msra.mxu0 %v173
  %184 = vmatprep.subr.bf16.mxu0 0
  %185 = vmatpush1.bf16.msra.mxu0 %v172
  %186 = vmatprep.subr.bf16.mxu0 0
  %187 = vmatpush1.bf16.msra.mxu0 %v171
  %188 = vmatprep.subr.bf16.mxu0 0
  %189 = vmatpush1.bf16.msra.mxu0 %v170
  %190 = vmatprep.subr.bf16.mxu0 0
  %191 = vmatpush1.bf16.msra.mxu0 %v169
  %192 = vmatprep.subr.bf16.mxu0 0
  %193 = vmatpush1.bf16.msra.mxu0 %v168
  %194 = vmatprep.subr.bf16.mxu0 0
  %195 = vmatpush1.bf16.msra.mxu0 %v167
  %196 = vmatprep.subr.bf16.mxu0 0
  %197 = vmatpush1.bf16.msra.mxu0 %v166
  %198 = vmatprep.subr.bf16.mxu0 0
  %199 = vmatpush2.bf16.msra.mxu0 0
  %200 = vmatprep.subr.bf16.mxu0 0
  %201 = vmatpush2.bf16.msra.mxu0 0
  %202 = vmatprep.subr.bf16.mxu0 0
  %203 = vmatpush2.bf16.msra.mxu0 0
  %204 = vmatprep.subr.bf16.mxu0 0
  %205 = vmatpush2.bf16.msra.mxu0 0
  %206 = vmatprep.subr.bf16.mxu0 0
  %207 = vmatpush2.bf16.msra.mxu0 0
  %208 = vmatprep.subr.bf16.mxu0 0
  %209 = vmatpush2.bf16.msra.mxu0 0
  %210 = vmatprep.subr.bf16.mxu0 0
  %211 = vmatpush2.bf16.msra.mxu0 0
  %212 = vmatprep.subr.bf16.mxu0 0
  %213 = vmatpush2.bf16.msra.mxu0 0
  %214 = vmatprep.mubr.bf16.mxu0 0
  %215 = vmatmul.mubr.bf16.gmra.mxu0 %v118
  %v216 = vpop.f32.mrf.mxu0
  %v217 = vadd.f32 0.0, %v216
  %v218 = vpop.f32.mrf.mxu0
  %v219 = vpop.f32.mrf.mxu0
  %v220 = vadd.f32 0.0, %v219
  %v221 = vpop.f32.mrf.mxu0
  %222 = vmatprep.mubr.bf16.mxu0 0
  %223 = vmatmul.mubr.bf16.gmra.mxu0 %v119
  %v224 = vpop.f32.mrf.mxu0
  %v225 = vadd.f32 0.0, %v224
  %v226 = vpop.f32.mrf.mxu0
  %v227 = vpop.f32.mrf.mxu0
  %v228 = vadd.f32 0.0, %v227
  %v229 = vpop.f32.mrf.mxu0
  %230 = vmatprep.mubr.bf16.mxu0 0
  %231 = vmatmul.mubr.bf16.gmra.mxu0 %v120
  %v232 = vpop.f32.mrf.mxu0
  %v233 = vadd.f32 0.0, %v232
  %v234 = vpop.f32.mrf.mxu0
  %v235 = vpop.f32.mrf.mxu0
  %v236 = vadd.f32 0.0, %v235
  %v237 = vpop.f32.mrf.mxu0
  %238 = vmatprep.mubr.bf16.mxu0 0
  %239 = vmatmul.mubr.bf16.gmra.mxu0 %v121
  %v240 = vpop.f32.mrf.mxu0
  %v241 = vadd.f32 0.0, %v240
  %v242 = vpop.f32.mrf.mxu0
  %v243 = vpop.f32.mrf.mxu0
  %v244 = vadd.f32 0.0, %v243
  %v245 = vpop.f32.mrf.mxu0
  %246 = vmatprep.mubr.bf16.mxu0 0
  %247 = vmatmul.mubr.bf16.gmra.mxu0 %v122
  %v248 = vpop.f32.mrf.mxu0
  %v249 = vadd.f32 0.0, %v248
  %v250 = vpop.f32.mrf.mxu0
  %v251 = vpop.f32.mrf.mxu0
  %v252 = vadd.f32 0.0, %v251
  %v253 = vpop.f32.mrf.mxu0
  %254 = vmatprep.mubr.bf16.mxu0 0
  %255 = vmatmul.mubr.bf16.gmra.mxu0 %v123
  %v256 = vpop.f32.mrf.mxu0
  %v257 = vadd.f32 0.0, %v256
  %v258 = vpop.f32.mrf.mxu0
  %v259 = vpop.f32.mrf.mxu0
  %v260 = vadd.f32 0.0, %v259
  %v261 = vpop.f32.mrf.mxu0
  %262 = vmatprep.mubr.bf16.mxu0 0
  %263 = vmatmul.mubr.bf16.gmra.mxu0 %v124
  %v264 = vpop.f32.mrf.mxu0
  %v265 = vadd.f32 0.0, %v264
  %v266 = vpop.f32.mrf.mxu0
  %v267 = vpop.f32.mrf.mxu0
  %v268 = vadd.f32 0.0, %v267
  %v269 = vpop.f32.mrf.mxu0
  %270 = vmatprep.mubr.bf16.mxu0 0
  %271 = vmatmul.mubr.bf16.gmra.mxu0 %v125
  %v272 = vpop.f32.mrf.mxu0
  %v273 = vadd.f32 0.0, %v272
  %v274 = vpop.f32.mrf.mxu0
  %v275 = vpop.f32.mrf.mxu0
  %v276 = vadd.f32 0.0, %v275
  %v277 = vpop.f32.mrf.mxu0
  %278 = vdwg.mxu0
  %v279 = vadd.f32 %v38, %v217
  %v280 = vadd.f32 %v39, %v220
  %v281 = vadd.f32 %v40, %v225
  %v282 = vadd.f32 %v41, %v228
  %v283 = vadd.f32 %v42, %v233
  %v284 = vadd.f32 %v43, %v236
  %v285 = vadd.f32 %v44, %v241
  %v286 = vadd.f32 %v45, %v244
  %v287 = vadd.f32 %v46, %v249
  %v288 = vadd.f32 %v47, %v252
  %v289 = vadd.f32 %v48, %v257
  %v290 = vadd.f32 %v49, %v260
  %v291 = vadd.f32 %v50, %v265
  %v292 = vadd.f32 %v51, %v268
  %v293 = vadd.f32 %v52, %v273
  %v294 = vadd.f32 %v53, %v276
  %295 = vst [vmem:[#allocation2] sm:$0xff] %v279
  %296 = vst [vmem:[#allocation2 + $0x8] sm:$0xff] %v280
  %297 = vst [vmem:[#allocation2 + $0x10] sm:$0xff] %v281
  %298 = vst [vmem:[#allocation2 + $0x18] sm:$0xff] %v282
  %299 = vst [vmem:[#allocation2 + $0x20] sm:$0xff] %v283
  %300 = vst [vmem:[#allocation2 + $0x28] sm:$0xff] %v284
  %301 = vst [vmem:[#allocation2 + $0x30] sm:$0xff] %v285
  %302 = vst [vmem:[#allocation2 + $0x38] sm:$0xff] %v286
  %303 = vst [vmem:[#allocation2 + $0x40] sm:$0xff] %v287
  %304 = vst [vmem:[#allocation2 + $0x48] sm:$0xff] %v288
  %305 = vst [vmem:[#allocation2 + $0x50] sm:$0xff] %v289
  %306 = vst [vmem:[#allocation2 + $0x58] sm:$0xff] %v290
  %307 = vst [vmem:[#allocation2 + $0x60] sm:$0xff] %v291
  %308 = vst [vmem:[#allocation2 + $0x68] sm:$0xff] %v292
  %309 = vst [vmem:[#allocation2 + $0x70] sm:$0xff] %v293
  %310 = vst [vmem:[#allocation2 + $0x78] sm:$0xff] %v294
  // Predicated region
  $region22: #{forward.9} parent=0 // pred_check
    %p311 = pneg %p18
  $region23: #{forward.9} parent=0 // pred_check_branch
    %313 = sbr.rel (%p311) target = $region25
  $region24: #{forward.9} parent=0 // pred_region
    %v314 = vld [vmem:[#allocation2] sm:$0xff]
    %v315 = vld [vmem:[#allocation2 + $0x8] sm:$0xff]
    %v316 = vld [vmem:[#allocation2 + $0x10] sm:$0xff]
    %v317 = vld [vmem:[#allocation2 + $0x18] sm:$0xff]
    %v318 = vld [vmem:[#allocation2 + $0x20] sm:$0xff]
    %v319 = vld [vmem:[#allocation2 + $0x28] sm:$0xff]
    %v320 = vld [vmem:[#allocation2 + $0x30] sm:$0xff]
    %v321 = vld [vmem:[#allocation2 + $0x38] sm:$0xff]
    %v322 = vld [vmem:[#allocation2 + $0x40] sm:$0xff]
    %v323 = vld [vmem:[#allocation2 + $0x48] sm:$0xff]
    %v324 = vld [vmem:[#allocation2 + $0x50] sm:$0xff]
    %v325 = vld [vmem:[#allocation2 + $0x58] sm:$0xff]
    %v326 = vld [vmem:[#allocation2 + $0x60] sm:$0xff]
    %v327 = vld [vmem:[#allocation2 + $0x68] sm:$0xff]
    %v328 = vld [vmem:[#allocation2 + $0x70] sm:$0xff]
    %v329 = vld [vmem:[#allocation2 + $0x78] sm:$0xff]
    %v330 = vld [vmem:[%s2] sm:$0x1]
    %v332 = vlaneseq
    %v333 = vshrl.u32 %v332, 7
    %v334 = vsub.s32 0, %v333
    %v335 = vrot.slane %v330, %v334
    %v337 = vmul.f32 %v314, %v335
    %v338 = vmul.f32 %v315, %v335
    %v339 = vmul.f32 %v316, %v335
    %v340 = vmul.f32 %v317, %v335
    %v341 = vmul.f32 %v318, %v335
    %v342 = vmul.f32 %v319, %v335
    %v343 = vmul.f32 %v320, %v335
    %v344 = vmul.f32 %v321, %v335
    %v345 = vmul.f32 %v322, %v335
    %v346 = vmul.f32 %v323, %v335
    %v347 = vmul.f32 %v324, %v335
    %v348 = vmul.f32 %v325, %v335
    %v349 = vmul.f32 %v326, %v335
    %v350 = vmul.f32 %v327, %v335
    %v351 = vmul.f32 %v328, %v335
    %v352 = vmul.f32 %v329, %v335
    %v353 = vld [vmem:[%s3] sm:$0x1]
    %v355 = vlaneseq
    %v356 = vshrl.u32 %v355, 7
    %v357 = vsub.s32 0, %v356
    %v358 = vrot.slane %v353, %v357
    %v360 = vadd.f32 %v337, %v358
    %v361 = vadd.f32 %v338, %v358
    %v362 = vadd.f32 %v339, %v358
    %v363 = vadd.f32 %v340, %v358
    %v364 = vadd.f32 %v341, %v358
    %v365 = vadd.f32 %v342, %v358
    %v366 = vadd.f32 %v343, %v358
    %v367 = vadd.f32 %v344, %v358
    %v368 = vadd.f32 %v345, %v358
    %v369 = vadd.f32 %v346, %v358
    %v370 = vadd.f32 %v347, %v358
    %v371 = vadd.f32 %v348, %v358
    %v372 = vadd.f32 %v349, %v358
    %v373 = vadd.f32 %v350, %v358
    %v374 = vadd.f32 %v351, %v358
    %v375 = vadd.f32 %v352, %v358
    %v376 = vpack.c.bf16 %v361, %v360
    %v377 = vpack.c.bf16 %v363, %v362
    %v378 = vpack.c.bf16 %v365, %v364
    %v379 = vpack.c.bf16 %v367, %v366
    %v380 = vpack.c.bf16 %v369, %v368
    %v381 = vpack.c.bf16 %v371, %v370
    %v382 = vpack.c.bf16 %v373, %v372
    %v383 = vpack.c.bf16 %v375, %v374
    %v392 = vunpack.c.l.b16 %v376
    %v393 = vunpack.c.h.b16 %v376
    %v394 = vunpack.c.l.b16 %v377
    %v395 = vunpack.c.h.b16 %v377
    %v396 = vunpack.c.l.b16 %v378
    %v397 = vunpack.c.h.b16 %v378
    %v398 = vunpack.c.l.b16 %v379
    %v399 = vunpack.c.h.b16 %v379
    %v400 = vunpack.c.l.b16 %v380
    %v401 = vunpack.c.h.b16 %v380
    %v402 = vunpack.c.l.b16 %v381
    %v403 = vunpack.c.h.b16 %v381
    %v404 = vunpack.c.l.b16 %v382
    %v405 = vunpack.c.h.b16 %v382
    %v406 = vunpack.c.l.b16 %v383
    %v407 = vunpack.c.h.b16 %v383
    %v408 = vpack.c.b16 %v392, %v392
    %v409 = vpack.c.b16 %v393, %v393
    %v410 = vpack.c.b16 %v394, %v394
    %v411 = vpack.c.b16 %v395, %v395
    %v412 = vpack.c.b16 %v396, %v396
    %v413 = vpack.c.b16 %v397, %v397
    %v414 = vpack.c.b16 %v398, %v398
    %v415 = vpack.c.b16 %v399, %v399
    %v416 = vpack.c.b16 %v400, %v400
    %v417 = vpack.c.b16 %v401, %v401
    %v418 = vpack.c.b16 %v402, %v402
    %v419 = vpack.c.b16 %v403, %v403
    %v420 = vpack.c.b16 %v404, %v404
    %v421 = vpack.c.b16 %v405, %v405
    %v422 = vpack.c.b16 %v406, %v406
    %v423 = vpack.c.b16 %v407, %v407
    %440 = vst [vmem:[%s4] sm:$0xf] %v408
    %441 = vst [vmem:[%s4 + $0x4] sm:$0xf] %v409
    %442 = vst [vmem:[%s4 + $0x8] sm:$0xf] %v410
    %443 = vst [vmem:[%s4 + $0xc] sm:$0xf] %v411
    %444 = vst [vmem:[%s4 + $0x10] sm:$0xf] %v412
    %445 = vst [vmem:[%s4 + $0x14] sm:$0xf] %v413
    %446 = vst [vmem:[%s4 + $0x18] sm:$0xf] %v414
    %447 = vst [vmem:[%s4 + $0x1c] sm:$0xf] %v415
    %448 = vst [vmem:[%s4 + $0x20] sm:$0xf] %v416
    %449 = vst [vmem:[%s4 + $0x24] sm:$0xf] %v417
    %450 = vst [vmem:[%s4 + $0x28] sm:$0xf] %v418
    %451 = vst [vmem:[%s4 + $0x2c] sm:$0xf] %v419
    %452 = vst [vmem:[%s4 + $0x30] sm:$0xf] %v420
    %453 = vst [vmem:[%s4 + $0x34] sm:$0xf] %v421
    %454 = vst [vmem:[%s4 + $0x38] sm:$0xf] %v422
    %455 = vst [vmem:[%s4 + $0x3c] sm:$0xf] %v423
  $region25: #{forward.9} parent=0 // pred_fallthru
    _
  // Predicated region
  $region26: #{forward.9} parent=0 // pred_check
    _
  $region27: #{forward.9} parent=0 // pred_check_branch
    %457 = sbr.rel (0) target = $region29
  $region28: #{forward.9} parent=0 // pred_region
    _
  $region29: #{forward.9} parent=0 // pred_fallthru
    _
  // Predicated region
  $region30: #{forward.9} parent=0 // pred_check
    _
  $region31: #{forward.9} parent=0 // pred_check_branch
    %459 = sbr.rel (0) target = $region33
  $region32: #{forward.9} parent=0 // pred_region
    _
  $region33: #{forward.9} parent=0 // pred_fallthru
    _

// kernel: forward.10
$region0: #{forward.10}
  #allocation0 [shape = 'u32[]', space=smem, size = 0x4, offset = 0x4, fixed_abs, tag = 'smem constant byte address 0x4 - core index']
  #allocation1 [shape = 'u32[144,128]{1,0:T(1,128)}', space=vmem, size = 0x12000, scoped, tag = 'internal scratch']
  #allocation2 [shape = 'f32[128,128]{1,0:T(8,128)}', space=vmem, size = 0x10000, scoped, tag = 'scratch operand']
  %s0 = inlined_call_operand.vmem [shape: bf16[128,128], index: 0, kind: input, shape index: {}]
  %s1 = inlined_call_operand.vmem [shape: bf16[128,128], index: 1, kind: input, shape index: {}]
  %s2 = inlined_call_operand.vmem [shape: f32[1,128], index: 2, kind: input, shape index: {}]
  %s3 = inlined_call_operand.vmem [shape: f32[1,128], index: 3, kind: input, shape index: {}]
  %s4 = inlined_call_operand.vmem [shape: bf16[128,128], index: 4, kind: input, shape index: {}]
  %s5 = inlined_call_operand.vmem [shape: bf16[128,128], index: 5, kind: output, shape index: {}]
  %s6 = sld [smem:[#allocation0]]
  $region38: #{forward.10} parent=0
    _
  %s8 = ssub.s32 1, %s6
  %s9 = scalar_select 0, %s8, %s6
  // Predicated region
  $region2: #{forward.10} parent=0 // pred_check
    _
  $region3: #{forward.10} parent=0 // pred_check_branch
    %11 = sbr.rel (0) target = $region5
  $region4: #{forward.10} parent=0 // pred_region
    _
  $region5: #{forward.10} parent=0 // pred_fallthru
    _
  // Predicated region
  $region6: #{forward.10} parent=0 // pred_check
    _
  $region7: #{forward.10} parent=0 // pred_check_branch
    %13 = sbr.rel (0) target = $region9
  $region8: #{forward.10} parent=0 // pred_region
    _
  $region9: #{forward.10} parent=0 // pred_fallthru
    _
  // Predicated region
  $region10: #{forward.10} parent=0 // pred_check
    _
  $region11: #{forward.10} parent=0 // pred_check_branch
    %15 = sbr.rel (0) target = $region13
  $region12: #{forward.10} parent=0 // pred_region
    _
  $region13: #{forward.10} parent=0 // pred_fallthru
    _
  // Predicated region
  $region14: #{forward.10} parent=0 // pred_check
    _
  $region15: #{forward.10} parent=0 // pred_check_branch
    %17 = sbr.rel (0) target = $region17
  $region16: #{forward.10} parent=0 // pred_region
    _
  $region17: #{forward.10} parent=0 // pred_fallthru
    _
  // Predicated region
  $region18: #{forward.10} parent=0 // pred_check
    _
  $region19: #{forward.10} parent=0 // pred_check_branch
    %19 = sbr.rel (0) target = $region21
  $region20: #{forward.10} parent=0 // pred_region
    _
  $region21: #{forward.10} parent=0 // pred_fallthru
    _
  %p21 = scmp.eq.s32.totalorder 0, 0
  // Predicated region
  $region22: #{forward.10} parent=0 // pred_check
    %p22 = pneg %p21
  $region23: #{forward.10} parent=0 // pred_check_branch
    %24 = sbr.rel (%p22) target = $region25
  $region24: #{forward.10} parent=0 // pred_region
    %25 = vst [vmem:[#allocation2] sm:$0xff] 0.0
    %26 = vst [vmem:[#allocation2 + $0x8] sm:$0xff] 0.0
    %27 = vst [vmem:[#allocation2 + $0x10] sm:$0xff] 0.0
    %28 = vst [vmem:[#allocation2 + $0x18] sm:$0xff] 0.0
    %29 = vst [vmem:[#allocation2 + $0x20] sm:$0xff] 0.0
    %30 = vst [vmem:[#allocation2 + $0x28] sm:$0xff] 0.0
    %31 = vst [vmem:[#allocation2 + $0x30] sm:$0xff] 0.0
    %32 = vst [vmem:[#allocation2 + $0x38] sm:$0xff] 0.0
    %33 = vst [vmem:[#allocation2 + $0x40] sm:$0xff] 0.0
    %34 = vst [vmem:[#allocation2 + $0x48] sm:$0xff] 0.0
    %35 = vst [vmem:[#allocation2 + $0x50] sm:$0xff] 0.0
    %36 = vst [vmem:[#allocation2 + $0x58] sm:$0xff] 0.0
    %37 = vst [vmem:[#allocation2 + $0x60] sm:$0xff] 0.0
    %38 = vst [vmem:[#allocation2 + $0x68] sm:$0xff] 0.0
    %39 = vst [vmem:[#allocation2 + $0x70] sm:$0xff] 0.0
    %40 = vst [vmem:[#allocation2 + $0x78] sm:$0xff] 0.0
  $region25: #{forward.10} parent=0 // pred_fallthru
    _
  %v41 = vld [vmem:[#allocation2] sm:$0xff]
  %v42 = vld [vmem:[#allocation2 + $0x8] sm:$0xff]
  %v43 = vld [vmem:[#allocation2 + $0x10] sm:$0xff]
  %v44 = vld [vmem:[#allocation2 + $0x18] sm:$0xff]
  %v45 = vld [vmem:[#allocation2 + $0x20] sm:$0xff]
  %v46 = vld [vmem:[#allocation2 + $0x28] sm:$0xff]
  %v47 = vld [vmem:[#allocation2 + $0x30] sm:$0xff]
  %v48 = vld [vmem:[#allocation2 + $0x38] sm:$0xff]
  %v49 = vld [vmem:[#allocation2 + $0x40] sm:$0xff]
  %v50 = vld [vmem:[#allocation2 + $0x48] sm:$0xff]
  %v51 = vld [vmem:[#allocation2 + $0x50] sm:$0xff]
  %v52 = vld [vmem:[#allocation2 + $0x58] sm:$0xff]
  %v53 = vld [vmem:[#allocation2 + $0x60] sm:$0xff]
  %v54 = vld [vmem:[#allocation2 + $0x68] sm:$0xff]
  %v55 = vld [vmem:[#allocation2 + $0x70] sm:$0xff]
  %v56 = vld [vmem:[#allocation2 + $0x78] sm:$0xff]
  %v57 = vld [vmem:[%s0] sm:$0xf]
  %v58 = vld [vmem:[%s0 + $0x4] sm:$0xf]
  %v59 = vld [vmem:[%s0 + $0x8] sm:$0xf]
  %v60 = vld [vmem:[%s0 + $0xc] sm:$0xf]
  %v61 = vld [vmem:[%s0 + $0x10] sm:$0xf]
  %v62 = vld [vmem:[%s0 + $0x14] sm:$0xf]
  %v63 = vld [vmem:[%s0 + $0x18] sm:$0xf]
  %v64 = vld [vmem:[%s0 + $0x1c] sm:$0xf]
  %v65 = vld [vmem:[%s0 + $0x20] sm:$0xf]
  %v66 = vld [vmem:[%s0 + $0x24] sm:$0xf]
  %v67 = vld [vmem:[%s0 + $0x28] sm:$0xf]
  %v68 = vld [vmem:[%s0 + $0x2c] sm:$0xf]
  %v69 = vld [vmem:[%s0 + $0x30] sm:$0xf]
  %v70 = vld [vmem:[%s0 + $0x34] sm:$0xf]
  %v71 = vld [vmem:[%s0 + $0x38] sm:$0xf]
  %v72 = vld [vmem:[%s0 + $0x3c] sm:$0xf]
  %v73 = vld [vmem:[%s1] sm:$0xf]
  %v74 = vld [vmem:[%s1 + $0x4] sm:$0xf]
  %v75 = vld [vmem:[%s1 + $0x8] sm:$0xf]
  %v76 = vld [vmem:[%s1 + $0xc] sm:$0xf]
  %v77 = vld [vmem:[%s1 + $0x10] sm:$0xf]
  %v78 = vld [vmem:[%s1 + $0x14] sm:$0xf]
  %v79 = vld [vmem:[%s1 + $0x18] sm:$0xf]
  %v80 = vld [vmem:[%s1 + $0x1c] sm:$0xf]
  %v81 = vld [vmem:[%s1 + $0x20] sm:$0xf]
  %v82 = vld [vmem:[%s1 + $0x24] sm:$0xf]
  %v83 = vld [vmem:[%s1 + $0x28] sm:$0xf]
  %v84 = vld [vmem:[%s1 + $0x2c] sm:$0xf]
  %v85 = vld [vmem:[%s1 + $0x30] sm:$0xf]
  %v86 = vld [vmem:[%s1 + $0x34] sm:$0xf]
  %v87 = vld [vmem:[%s1 + $0x38] sm:$0xf]
  %v88 = vld [vmem:[%s1 + $0x3c] sm:$0xf]
  %v105 = vunpack.c.l.b16 %v57
  %v106 = vunpack.c.l.b16 %v58
  %v107 = vunpack.c.l.b16 %v59
  %v108 = vunpack.c.l.b16 %v60
  %v109 = vunpack.c.l.b16 %v61
  %v110 = vunpack.c.l.b16 %v62
  %v111 = vunpack.c.l.b16 %v63
  %v112 = vunpack.c.l.b16 %v64
  %v113 = vunpack.c.l.b16 %v65
  %v114 = vunpack.c.l.b16 %v66
  %v115 = vunpack.c.l.b16 %v67
  %v116 = vunpack.c.l.b16 %v68
  %v117 = vunpack.c.l.b16 %v69
  %v118 = vunpack.c.l.b16 %v70
  %v119 = vunpack.c.l.b16 %v71
  %v120 = vunpack.c.l.b16 %v72
  %v121 = vpack.c.b16 %v106, %v105
  %v122 = vpack.c.b16 %v108, %v107
  %v123 = vpack.c.b16 %v110, %v109
  %v124 = vpack.c.b16 %v112, %v111
  %v125 = vpack.c.b16 %v114, %v113
  %v126 = vpack.c.b16 %v116, %v115
  %v127 = vpack.c.b16 %v118, %v117
  %v128 = vpack.c.b16 %v120, %v119
  %v153 = vunpack.c.l.b16 %v73
  %v154 = vunpack.c.l.b16 %v74
  %v155 = vunpack.c.l.b16 %v75
  %v156 = vunpack.c.l.b16 %v76
  %v157 = vunpack.c.l.b16 %v77
  %v158 = vunpack.c.l.b16 %v78
  %v159 = vunpack.c.l.b16 %v79
  %v160 = vunpack.c.l.b16 %v80
  %v161 = vunpack.c.l.b16 %v81
  %v162 = vunpack.c.l.b16 %v82
  %v163 = vunpack.c.l.b16 %v83
  %v164 = vunpack.c.l.b16 %v84
  %v165 = vunpack.c.l.b16 %v85
  %v166 = vunpack.c.l.b16 %v86
  %v167 = vunpack.c.l.b16 %v87
  %v168 = vunpack.c.l.b16 %v88
  %v169 = vpack.c.b16 %v154, %v153
  %v170 = vpack.c.b16 %v156, %v155
  %v171 = vpack.c.b16 %v158, %v157
  %v172 = vpack.c.b16 %v160, %v159
  %v173 = vpack.c.b16 %v162, %v161
  %v174 = vpack.c.b16 %v164, %v163
  %v175 = vpack.c.b16 %v166, %v165
  %v176 = vpack.c.b16 %v168, %v167
  %185 = vmatprep.subr.bf16.mxu0 0
  %186 = vmatpush1.bf16.msra.mxu0 %v176
  %187 = vmatprep.subr.bf16.mxu0 0
  %188 = vmatpush1.bf16.msra.mxu0 %v175
  %189 = vmatprep.subr.bf16.mxu0 0
  %190 = vmatpush1.bf16.msra.mxu0 %v174
  %191 = vmatprep.subr.bf16.mxu0 0
  %192 = vmatpush1.bf16.msra.mxu0 %v173
  %193 = vmatprep.subr.bf16.mxu0 0
  %194 = vmatpush1.bf16.msra.mxu0 %v172
  %195 = vmatprep.subr.bf16.mxu0 0
  %196 = vmatpush1.bf16.msra.mxu0 %v171
  %197 = vmatprep.subr.bf16.mxu0 0
  %198 = vmatpush1.bf16.msra.mxu0 %v170
  %199 = vmatprep.subr.bf16.mxu0 0
  %200 = vmatpush1.bf16.msra.mxu0 %v169
  %201 = vmatprep.subr.bf16.mxu0 0
  %202 = vmatpush2.bf16.msra.mxu0 0
  %203 = vmatprep.subr.bf16.mxu0 0
  %204 = vmatpush2.bf16.msra.mxu0 0
  %205 = vmatprep.subr.bf16.mxu0 0
  %206 = vmatpush2.bf16.msra.mxu0 0
  %207 = vmatprep.subr.bf16.mxu0 0
  %208 = vmatpush2.bf16.msra.mxu0 0
  %209 = vmatprep.subr.bf16.mxu0 0
  %210 = vmatpush2.bf16.msra.mxu0 0
  %211 = vmatprep.subr.bf16.mxu0 0
  %212 = vmatpush2.bf16.msra.mxu0 0
  %213 = vmatprep.subr.bf16.mxu0 0
  %214 = vmatpush2.bf16.msra.mxu0 0
  %215 = vmatprep.subr.bf16.mxu0 0
  %216 = vmatpush2.bf16.msra.mxu0 0
  %217 = vmatprep.mubr.bf16.mxu0 0
  %218 = vmatmul.mubr.bf16.gmra.mxu0 %v121
  %v219 = vpop.f32.mrf.mxu0
  %v220 = vadd.f32 0.0, %v219
  %v221 = vpop.f32.mrf.mxu0
  %v222 = vpop.f32.mrf.mxu0
  %v223 = vadd.f32 0.0, %v222
  %v224 = vpop.f32.mrf.mxu0
  %225 = vmatprep.mubr.bf16.mxu0 0
  %226 = vmatmul.mubr.bf16.gmra.mxu0 %v122
  %v227 = vpop.f32.mrf.mxu0
  %v228 = vadd.f32 0.0, %v227
  %v229 = vpop.f32.mrf.mxu0
  %v230 = vpop.f32.mrf.mxu0
  %v231 = vadd.f32 0.0, %v230
  %v232 = vpop.f32.mrf.mxu0
  %233 = vmatprep.mubr.bf16.mxu0 0
  %234 = vmatmul.mubr.bf16.gmra.mxu0 %v123
  %v235 = vpop.f32.mrf.mxu0
  %v236 = vadd.f32 0.0, %v235
  %v237 = vpop.f32.mrf.mxu0
  %v238 = vpop.f32.mrf.mxu0
  %v239 = vadd.f32 0.0, %v238
  %v240 = vpop.f32.mrf.mxu0
  %241 = vmatprep.mubr.bf16.mxu0 0
  %242 = vmatmul.mubr.bf16.gmra.mxu0 %v124
  %v243 = vpop.f32.mrf.mxu0
  %v244 = vadd.f32 0.0, %v243
  %v245 = vpop.f32.mrf.mxu0
  %v246 = vpop.f32.mrf.mxu0
  %v247 = vadd.f32 0.0, %v246
  %v248 = vpop.f32.mrf.mxu0
  %249 = vmatprep.mubr.bf16.mxu0 0
  %250 = vmatmul.mubr.bf16.gmra.mxu0 %v125
  %v251 = vpop.f32.mrf.mxu0
  %v252 = vadd.f32 0.0, %v251
  %v253 = vpop.f32.mrf.mxu0
  %v254 = vpop.f32.mrf.mxu0
  %v255 = vadd.f32 0.0, %v254
  %v256 = vpop.f32.mrf.mxu0
  %257 = vmatprep.mubr.bf16.mxu0 0
  %258 = vmatmul.mubr.bf16.gmra.mxu0 %v126
  %v259 = vpop.f32.mrf.mxu0
  %v260 = vadd.f32 0.0, %v259
  %v261 = vpop.f32.mrf.mxu0
  %v262 = vpop.f32.mrf.mxu0
  %v263 = vadd.f32 0.0, %v262
  %v264 = vpop.f32.mrf.mxu0
  %265 = vmatprep.mubr.bf16.mxu0 0
  %266 = vmatmul.mubr.bf16.gmra.mxu0 %v127
  %v267 = vpop.f32.mrf.mxu0
  %v268 = vadd.f32 0.0, %v267
  %v269 = vpop.f32.mrf.mxu0
  %v270 = vpop.f32.mrf.mxu0
  %v271 = vadd.f32 0.0, %v270
  %v272 = vpop.f32.mrf.mxu0
  %273 = vmatprep.mubr.bf16.mxu0 0
  %274 = vmatmul.mubr.bf16.gmra.mxu0 %v128
  %v275 = vpop.f32.mrf.mxu0
  %v276 = vadd.f32 0.0, %v275
  %v277 = vpop.f32.mrf.mxu0
  %v278 = vpop.f32.mrf.mxu0
  %v279 = vadd.f32 0.0, %v278
  %v280 = vpop.f32.mrf.mxu0
  %281 = vdwg.mxu0
  %v282 = vadd.f32 %v41, %v220
  %v283 = vadd.f32 %v42, %v223
  %v284 = vadd.f32 %v43, %v228
  %v285 = vadd.f32 %v44, %v231
  %v286 = vadd.f32 %v45, %v236
  %v287 = vadd.f32 %v46, %v239
  %v288 = vadd.f32 %v47, %v244
  %v289 = vadd.f32 %v48, %v247
  %v290 = vadd.f32 %v49, %v252
  %v291 = vadd.f32 %v50, %v255
  %v292 = vadd.f32 %v51, %v260
  %v293 = vadd.f32 %v52, %v263
  %v294 = vadd.f32 %v53, %v268
  %v295 = vadd.f32 %v54, %v271
  %v296 = vadd.f32 %v55, %v276
  %v297 = vadd.f32 %v56, %v279
  %298 = vst [vmem:[#allocation2] sm:$0xff] %v282
  %299 = vst [vmem:[#allocation2 + $0x8] sm:$0xff] %v283
  %300 = vst [vmem:[#allocation2 + $0x10] sm:$0xff] %v284
  %301 = vst [vmem:[#allocation2 + $0x18] sm:$0xff] %v285
  %302 = vst [vmem:[#allocation2 + $0x20] sm:$0xff] %v286
  %303 = vst [vmem:[#allocation2 + $0x28] sm:$0xff] %v287
  %304 = vst [vmem:[#allocation2 + $0x30] sm:$0xff] %v288
  %305 = vst [vmem:[#allocation2 + $0x38] sm:$0xff] %v289
  %306 = vst [vmem:[#allocation2 + $0x40] sm:$0xff] %v290
  %307 = vst [vmem:[#allocation2 + $0x48] sm:$0xff] %v291
  %308 = vst [vmem:[#allocation2 + $0x50] sm:$0xff] %v292
  %309 = vst [vmem:[#allocation2 + $0x58] sm:$0xff] %v293
  %310 = vst [vmem:[#allocation2 + $0x60] sm:$0xff] %v294
  %311 = vst [vmem:[#allocation2 + $0x68] sm:$0xff] %v295
  %312 = vst [vmem:[#allocation2 + $0x70] sm:$0xff] %v296
  %313 = vst [vmem:[#allocation2 + $0x78] sm:$0xff] %v297
  // Predicated region
  $region26: #{forward.10} parent=0 // pred_check
    %p314 = pneg %p21
  $region27: #{forward.10} parent=0 // pred_check_branch
    %316 = sbr.rel (%p314) target = $region29
  $region28: #{forward.10} parent=0 // pred_region
    %v317 = vld [vmem:[#allocation2] sm:$0xff]
    %v318 = vld [vmem:[#allocation2 + $0x8] sm:$0xff]
    %v319 = vld [vmem:[#allocation2 + $0x10] sm:$0xff]
    %v320 = vld [vmem:[#allocation2 + $0x18] sm:$0xff]
    %v321 = vld [vmem:[#allocation2 + $0x20] sm:$0xff]
    %v322 = vld [vmem:[#allocation2 + $0x28] sm:$0xff]
    %v323 = vld [vmem:[#allocation2 + $0x30] sm:$0xff]
    %v324 = vld [vmem:[#allocation2 + $0x38] sm:$0xff]
    %v325 = vld [vmem:[#allocation2 + $0x40] sm:$0xff]
    %v326 = vld [vmem:[#allocation2 + $0x48] sm:$0xff]
    %v327 = vld [vmem:[#allocation2 + $0x50] sm:$0xff]
    %v328 = vld [vmem:[#allocation2 + $0x58] sm:$0xff]
    %v329 = vld [vmem:[#allocation2 + $0x60] sm:$0xff]
    %v330 = vld [vmem:[#allocation2 + $0x68] sm:$0xff]
    %v331 = vld [vmem:[#allocation2 + $0x70] sm:$0xff]
    %v332 = vld [vmem:[#allocation2 + $0x78] sm:$0xff]
    %v333 = vld [vmem:[%s2] sm:$0x1]
    %v335 = vlaneseq
    %v336 = vshrl.u32 %v335, 7
    %v337 = vsub.s32 0, %v336
    %v338 = vrot.slane %v333, %v337
    %v340 = vmul.f32 %v317, %v338
    %v341 = vmul.f32 %v318, %v338
    %v342 = vmul.f32 %v319, %v338
    %v343 = vmul.f32 %v320, %v338
    %v344 = vmul.f32 %v321, %v338
    %v345 = vmul.f32 %v322, %v338
    %v346 = vmul.f32 %v323, %v338
    %v347 = vmul.f32 %v324, %v338
    %v348 = vmul.f32 %v325, %v338
    %v349 = vmul.f32 %v326, %v338
    %v350 = vmul.f32 %v327, %v338
    %v351 = vmul.f32 %v328, %v338
    %v352 = vmul.f32 %v329, %v338
    %v353 = vmul.f32 %v330, %v338
    %v354 = vmul.f32 %v331, %v338
    %v355 = vmul.f32 %v332, %v338
    %v356 = vld [vmem:[%s3] sm:$0x1]
    %v358 = vlaneseq
    %v359 = vshrl.u32 %v358, 7
    %v360 = vsub.s32 0, %v359
    %v361 = vrot.slane %v356, %v360
    %v363 = vadd.f32 %v340, %v361
    %v364 = vadd.f32 %v341, %v361
    %v365 = vadd.f32 %v342, %v361
    %v366 = vadd.f32 %v343, %v361
    %v367 = vadd.f32 %v344, %v361
    %v368 = vadd.f32 %v345, %v361
    %v369 = vadd.f32 %v346, %v361
    %v370 = vadd.f32 %v347, %v361
    %v371 = vadd.f32 %v348, %v361
    %v372 = vadd.f32 %v349, %v361
    %v373 = vadd.f32 %v350, %v361
    %v374 = vadd.f32 %v351, %v361
    %v375 = vadd.f32 %v352, %v361
    %v376 = vadd.f32 %v353, %v361
    %v377 = vadd.f32 %v354, %v361
    %v378 = vadd.f32 %v355, %v361
    %v379 = vld [vmem:[%s4] sm:$0xf]
    %v380 = vld [vmem:[%s4 + $0x4] sm:$0xf]
    %v381 = vld [vmem:[%s4 + $0x8] sm:$0xf]
    %v382 = vld [vmem:[%s4 + $0xc] sm:$0xf]
    %v383 = vld [vmem:[%s4 + $0x10] sm:$0xf]
    %v384 = vld [vmem:[%s4 + $0x14] sm:$0xf]
    %v385 = vld [vmem:[%s4 + $0x18] sm:$0xf]
    %v386 = vld [vmem:[%s4 + $0x1c] sm:$0xf]
    %v387 = vld [vmem:[%s4 + $0x20] sm:$0xf]
    %v388 = vld [vmem:[%s4 + $0x24] sm:$0xf]
    %v389 = vld [vmem:[%s4 + $0x28] sm:$0xf]
    %v390 = vld [vmem:[%s4 + $0x2c] sm:$0xf]
    %v391 = vld [vmem:[%s4 + $0x30] sm:$0xf]
    %v392 = vld [vmem:[%s4 + $0x34] sm:$0xf]
    %v393 = vld [vmem:[%s4 + $0x38] sm:$0xf]
    %v394 = vld [vmem:[%s4 + $0x3c] sm:$0xf]
    %v395 = vunpack.c.l.bf16 %v379
    %v396 = vunpack.c.l.bf16 %v380
    %v397 = vunpack.c.l.bf16 %v381
    %v398 = vunpack.c.l.bf16 %v382
    %v399 = vunpack.c.l.bf16 %v383
    %v400 = vunpack.c.l.bf16 %v384
    %v401 = vunpack.c.l.bf16 %v385
    %v402 = vunpack.c.l.bf16 %v386
    %v403 = vunpack.c.l.bf16 %v387
    %v404 = vunpack.c.l.bf16 %v388
    %v405 = vunpack.c.l.bf16 %v389
    %v406 = vunpack.c.l.bf16 %v390
    %v407 = vunpack.c.l.bf16 %v391
    %v408 = vunpack.c.l.bf16 %v392
    %v409 = vunpack.c.l.bf16 %v393
    %v410 = vunpack.c.l.bf16 %v394
    %v411 = vadd.f32 %v363, %v395
    %v412 = vadd.f32 %v364, %v396
    %v413 = vadd.f32 %v365, %v397
    %v414 = vadd.f32 %v366, %v398
    %v415 = vadd.f32 %v367, %v399
    %v416 = vadd.f32 %v368, %v400
    %v417 = vadd.f32 %v369, %v401
    %v418 = vadd.f32 %v370, %v402
    %v419 = vadd.f32 %v371, %v403
    %v420 = vadd.f32 %v372, %v404
    %v421 = vadd.f32 %v373, %v405
    %v422 = vadd.f32 %v374, %v406
    %v423 = vadd.f32 %v375, %v407
    %v424 = vadd.f32 %v376, %v408
    %v425 = vadd.f32 %v377, %v409
    %v426 = vadd.f32 %v378, %v410
    %v427 = vmax.f32 %v411, 0.0
    %v428 = vmax.f32 %v412, 0.0
    %v429 = vmax.f32 %v413, 0.0
    %v430 = vmax.f32 %v414, 0.0
    %v431 = vmax.f32 %v415, 0.0
    %v432 = vmax.f32 %v416, 0.0
    %v433 = vmax.f32 %v417, 0.0
    %v434 = vmax.f32 %v418, 0.0
    %v435 = vmax.f32 %v419, 0.0
    %v436 = vmax.f32 %v420, 0.0
    %v437 = vmax.f32 %v421, 0.0
    %v438 = vmax.f32 %v422, 0.0
    %v439 = vmax.f32 %v423, 0.0
    %v440 = vmax.f32 %v424, 0.0
    %v441 = vmax.f32 %v425, 0.0
    %v442 = vmax.f32 %v426, 0.0
    %v443 = vpack.c.bf16 %v428, %v427
    %v444 = vpack.c.bf16 %v430, %v429
    %v445 = vpack.c.bf16 %v432, %v431
    %v446 = vpack.c.bf16 %v434, %v433
    %v447 = vpack.c.bf16 %v436, %v435
    %v448 = vpack.c.bf16 %v438, %v437
    %v449 = vpack.c.bf16 %v440, %v439
    %v450 = vpack.c.bf16 %v442, %v441
    %v459 = vunpack.c.l.b16 %v443
    %v460 = vunpack.c.h.b16 %v443
    %v461 = vunpack.c.l.b16 %v444
    %v462 = vunpack.c.h.b16 %v444
    %v463 = vunpack.c.l.b16 %v445
    %v464 = vunpack.c.h.b16 %v445
    %v465 = vunpack.c.l.b16 %v446
    %v466 = vunpack.c.h.b16 %v446
    %v467 = vunpack.c.l.b16 %v447
    %v468 = vunpack.c.h.b16 %v447
    %v469 = vunpack.c.l.b16 %v448
    %v470 = vunpack.c.h.b16 %v448
    %v471 = vunpack.c.l.b16 %v449
    %v472 = vunpack.c.h.b16 %v449
    %v473 = vunpack.c.l.b16 %v450
    %v474 = vunpack.c.h.b16 %v450
    %v475 = vpack.c.b16 %v459, %v459
    %v476 = vpack.c.b16 %v460, %v460
    %v477 = vpack.c.b16 %v461, %v461
    %v478 = vpack.c.b16 %v462, %v462
    %v479 = vpack.c.b16 %v463, %v463
    %v480 = vpack.c.b16 %v464, %v464
    %v481 = vpack.c.b16 %v465, %v465
    %v482 = vpack.c.b16 %v466, %v466
    %v483 = vpack.c.b16 %v467, %v467
    %v484 = vpack.c.b16 %v468, %v468
    %v485 = vpack.c.b16 %v469, %v469
    %v486 = vpack.c.b16 %v470, %v470
    %v487 = vpack.c.b16 %v471, %v471
    %v488 = vpack.c.b16 %v472, %v472
    %v489 = vpack.c.b16 %v473, %v473
    %v490 = vpack.c.b16 %v474, %v474
    %507 = vst [vmem:[%s5] sm:$0xf] %v475
    %508 = vst [vmem:[%s5 + $0x4] sm:$0xf] %v476
    %509 = vst [vmem:[%s5 + $0x8] sm:$0xf] %v477
    %510 = vst [vmem:[%s5 + $0xc] sm:$0xf] %v478
    %511 = vst [vmem:[%s5 + $0x10] sm:$0xf] %v479
    %512 = vst [vmem:[%s5 + $0x14] sm:$0xf] %v480
    %513 = vst [vmem:[%s5 + $0x18] sm:$0xf] %v481
    %514 = vst [vmem:[%s5 + $0x1c] sm:$0xf] %v482
    %515 = vst [vmem:[%s5 + $0x20] sm:$0xf] %v483
    %516 = vst [vmem:[%s5 + $0x24] sm:$0xf] %v484
    %517 = vst [vmem:[%s5 + $0x28] sm:$0xf] %v485
    %518 = vst [vmem:[%s5 + $0x2c] sm:$0xf] %v486
    %519 = vst [vmem:[%s5 + $0x30] sm:$0xf] %v487
    %520 = vst [vmem:[%s5 + $0x34] sm:$0xf] %v488
    %521 = vst [vmem:[%s5 + $0x38] sm:$0xf] %v489
    %522 = vst [vmem:[%s5 + $0x3c] sm:$0xf] %v490
  $region29: #{forward.10} parent=0 // pred_fallthru
    _
  // Predicated region
  $region30: #{forward.10} parent=0 // pred_check
    _
  $region31: #{forward.10} parent=0 // pred_check_branch
    %524 = sbr.rel (0) target = $region33
  $region32: #{forward.10} parent=0 // pred_region
    _
  $region33: #{forward.10} parent=0 // pred_fallthru
    _
  // Predicated region
  $region34: #{forward.10} parent=0 // pred_check
    _
  $region35: #{forward.10} parent=0 // pred_check_branch
    %526 = sbr.rel (0) target = $region37
  $region36: #{forward.10} parent=0 // pred_region
    _
  $region37: #{forward.10} parent=0 // pred_fallthru
    _

</llo_original>
